<compile_context>
chip_gen: v7x
topology: tpu7x:2x2x1
jax: 0.10.0
libtpu: 0.0.40
codegen_flags: <defaults>
</compile_context>

<pallas_src>
import functools

import jax
import jax.numpy as jnp
from jax.experimental import pallas as pl
from jax.experimental.pallas import tpu as pltpu


_GUARD = 8  # scratch guard rows above/below the o1 slab (sublane aligned)


# ----------------------------- small helpers -------------------------------

def _round_up(a, b):
    return ((a + b - 1) // b) * b


def _vmem_limit_bytes():
    """Generation-aware scoped-VMEM limit (v5e/v6e: 128 MiB, v7x: 64 MiB)."""
    try:
        cap = getattr(pltpu.get_tpu_info(), "vmem_capacity_bytes", 0) or 0
    except Exception:
        cap = 0
    if cap >= (96 << 20):
        return 96 * 1024 * 1024
    return 48 * 1024 * 1024


def _pick_tr(n, h, wp, cinp, cmidp, vmem_budget):
    """Output rows computed per grid step.  Must divide `h`.  Largest divisor
    that fits the VMEM budget while keeping >= 8 grid steps when possible
    (>= 4 per TensorCore after megacore sharding on v7x)."""
    divisors = [d for d in range(1, h + 1) if h % d == 0]

    def est(tr):
        mi = tr * wp
        b = 0
        b += 2 * tr * wp * cinp * 2                                  # x main tile (dbl buf)
        b += 2 * 2 * wp * cinp * 2                                   # halo rows
        b += 2 * tr * wp * cinp * 2                                  # output tile (dbl buf)
        b += (2 * _GUARD + (tr + 2) * wp) * cmidp * 2                # o1 scratch slab
        b += 2 * 2 * (cinp * cmidp + 9 * cmidp * cmidp + cmidp * cinp)  # weights (dbl buf)
        b += mi * (cmidp * 4 + cmidp * 2 + cinp * 4 + cinp * 2)      # live values
        return b

    fitting = [d for d in divisors if est(d) <= vmem_budget] or [divisors[0]]
    for min_steps in (8, 4, 2, 1):
        cands = [d for d in fitting if n * (h // d) >= min_steps]
        if cands:
            return max(cands)
    return max(fitting)


# ------------------------------ fused kernel --------------------------------

def _bottleneck_kernel(xm_ref, xh0_ref, xh1_ref,
                       w1_ref, b1_ref, w2_ref, b2_ref, w3_ref, b3_ref,
                       o_ref, o1_scr,
                       *, tr, w_img, wp, offsets):
    """One grid step = one image `b`, one strip of `tr` output rows.

    xm_ref : (1, tr, wp, Cinp)  padded rows [i*tr, i*tr+tr) of the padded image
    xh0/1  : (1, 1,  wp, Cinp)  the two trailing halo rows
    o_ref  : (1, tr, wp, Coutp) output rows [i*tr, i*tr+tr) (padded width)
    o1_scr : contiguous VMEM slab holding conv1 output for all tr+2 rows.
    """
    i = pl.program_id(1)
    last = pl.num_programs(1) - 1
    cmid = w1_ref.shape[1]
    cout = o_ref.shape[-1]
    mi = tr * wp
    slab_lo = _GUARD
    slab_hi = _GUARD + (tr + 2) * wp

    # Guard rows only ever feed (later cropped) padding-column outputs; keep
    # them zero so no stale-VMEM garbage flows anywhere.
    o1_scr[0:slab_lo, :] = jnp.zeros((slab_lo, cmid), o1_scr.dtype)
    o1_scr[slab_hi:slab_hi + _GUARD, :] = jnp.zeros((_GUARD, cmid), o1_scr.dtype)

    # ---- conv1 (1x1) + folded BN + ReLU, masked at spatial-padding pixels ----
    w1 = w1_ref[...]
    b1 = b1_ref[...]
    col = jax.lax.broadcasted_iota(jnp.int32, (mi, 1), 0) % wp
    keep_col = jnp.logical_and(col >= 1, col <= w_img)

    xm = xm_ref[...].reshape(mi, xm_ref.shape[-1])
    o1m = jnp.maximum(jnp.dot(xm, w1, preferred_element_type=jnp.float32) + b1, 0.0)
    row = jax.lax.broadcasted_iota(jnp.int32, (mi, 1), 0)
    # first strip's first row is the image's zero top-pad row -> o1 must be 0
    keep_m = jnp.logical_and(keep_col, jnp.logical_or(i != 0, row >= wp))
    o1_scr[slab_lo:slab_lo + mi, :] = jnp.where(keep_m, o1m, 0.0).astype(o1_scr.dtype)

    keep_h = keep_col[:wp, :]
    xh0 = xh0_ref[...].reshape(wp, xh0_ref.shape[-1])
    o1h0 = jnp.maximum(jnp.dot(xh0, w1, preferred_element_type=jnp.float32) + b1, 0.0)
    o1_scr[slab_lo + mi:slab_lo + mi + wp, :] = \
        jnp.where(keep_h, o1h0, 0.0).astype(o1_scr.dtype)

    xh1 = xh1_ref[...].reshape(wp, xh1_ref.shape[-1])
    o1h1 = jnp.maximum(jnp.dot(xh1, w1, preferred_element_type=jnp.float32) + b1, 0.0)
    # last strip's second halo row is the image's zero bottom-pad row
    keep_h1 = jnp.logical_and(keep_h, i != last)
    o1_scr[slab_lo + mi + wp:slab_hi, :] = \
        jnp.where(keep_h1, o1h1, 0.0).astype(o1_scr.dtype)

    # ---- conv2 (3x3, pad 1) + folded BN + ReLU: 9-tap reduction over the slab
    base = slab_lo + wp
    acc = jnp.zeros((mi, cmid), jnp.float32)
    for t, off in enumerate(offsets):                       # 9 static taps
        patch = o1_scr[base + off:base + off + mi, :]
        acc = acc + jnp.dot(patch, w2_ref[t], preferred_element_type=jnp.float32)
    o2 = jnp.maximum(acc + b2_ref[...], 0.0).astype(jnp.bfloat16)

    # ---- conv3 (1x1) + folded BN + residual + ReLU ---------------------------
    y = jnp.dot(o2, w3_ref[...], preferred_element_type=jnp.float32) + b3_ref[...]
    # Residual = x at the strip's output rows; it straddles the main / halo0
    # blocks already resident in VMEM, so add + store in two aligned pieces.
    if tr > 1:
        y_top = jnp.maximum(y[:(tr - 1) * wp, :] + xm[wp:, :].astype(jnp.float32), 0.0)
        o_ref[:, :tr - 1, :, :] = y_top.reshape(1, tr - 1, wp, cout).astype(o_ref.dtype)
    y_bot = jnp.maximum(y[(tr - 1) * wp:, :] + xh0.astype(jnp.float32), 0.0)
    o_ref[:, tr - 1:, :, :] = y_bot.reshape(1, 1, wp, cout).astype(o_ref.dtype)


# ------------------------------- JAX glue -----------------------------------

def _bn_fold(gamma, beta, mean, var, eps=1e-5):
    scale = gamma / jnp.sqrt(var + eps)
    return scale, beta - mean * scale


def _prep_1x1(w_oihw, scale, bias, kp, np_):
    """Fold BN scale into a 1x1 conv weight, pad channels, cast bf16."""
    cout, cin = w_oihw.shape[0], w_oihw.shape[1]
    wt = w_oihw.reshape(cout, cin).T * scale[None, :]
    wpad = jnp.zeros((kp, np_), jnp.float32).at[:cin, :cout].set(wt).astype(jnp.bfloat16)
    bpad = jnp.zeros((1, np_), jnp.float32).at[0, :cout].set(bias)
    return wpad, bpad


def _prep_3x3(w_oihw, scale, bias, kp, np_):
    """Per-tap (cin, cout) weights, BN-scale folded, channel padded, bf16."""
    cout, cin = w_oihw.shape[0], w_oihw.shape[1]
    taps = []
    for kh in range(3):
        for kw in range(3):
            wt = w_oihw[:, :, kh, kw].T * scale[None, :]
            taps.append(jnp.zeros((kp, np_), jnp.float32).at[:cin, :cout].set(wt))
    w_taps = jnp.stack(taps, axis=0).astype(jnp.bfloat16)   # (9, kp, np_)
    bpad = jnp.zeros((1, np_), jnp.float32).at[0, :cout].set(bias)
    return w_taps, bpad


def stage_forward(x_nchw, p):
    """Identity bottleneck block (conv1x1-bn-relu, conv3x3-bn-relu, conv1x1-bn,
    +residual, relu), fully fused in one pallas_call.  NCHW in/out."""
    n, cin, h, w = x_nchw.shape
    cmid = p['w1'].shape[0]
    cinp = _round_up(cin, 128)
    cmidp = _round_up(cmid, 128)
    wp = _round_up(w + 2, 8)                 # padded row width (>= w+2, sublane aligned)

    vmem_limit = _vmem_limit_bytes()
    tr = _pick_tr(n, h, wp, cinp, cmidp, (2 * vmem_limit) // 3)

    # Fold BN into weights/biases, pad channels to 128 multiples, cast bf16.
    s1, b1 = _bn_fold(p['g1'], p['be1'], p['m1'], p['v1'])
    w1p, b1p = _prep_1x1(p['w1'], s1, b1, cinp, cmidp)
    s2, b2 = _bn_fold(p['g2'], p['be2'], p['m2'], p['v2'])
    w2t, b2p = _prep_3x3(p['w2'], s2, b2, cmidp, cmidp)
    s3, b3 = _bn_fold(p['g3'], p['be3'], p['m3'], p['v3'])
    w3p, b3p = _prep_1x1(p['w3'], s3, b3, cmidp, cinp)

    # NCHW -> NHWC, single spatial pad (1 row top/bottom, 1 col left, rest right
    # to the aligned width), channel pad to 128, bf16.  This is the only XLA
    # pass over the activation before the fused kernel.
    x_nhwc = jnp.transpose(x_nchw, (0, 2, 3, 1)).astype(jnp.bfloat16)
    xpad = jnp.pad(x_nhwc, ((0, 0), (1, 1), (1, wp - w - 1), (0, cinp - cin)))

    offsets = [(kh - 1) * wp + (kw - 1) for kh in range(3) for kw in range(3)]
    kernel = functools.partial(_bottleneck_kernel, tr=tr, w_img=w, wp=wp,
                               offsets=offsets)

    grid = (n, h // tr)
    cst2 = lambda b_, i_: (0, 0)
    in_specs = [
        pl.BlockSpec((1, tr, wp, cinp), lambda b_, i_: (b_, i_, 0, 0)),          # main rows
        pl.BlockSpec((1, 1, wp, cinp), lambda b_, i_: (b_, (i_ + 1) * tr, 0, 0)),     # halo 0
        pl.BlockSpec((1, 1, wp, cinp), lambda b_, i_: (b_, (i_ + 1) * tr + 1, 0, 0)),  # halo 1
        pl.BlockSpec((cinp, cmidp), cst2),                                        # w1 (folded)
        pl.BlockSpec((1, cmidp), cst2),                                           # b1
        pl.BlockSpec((9, cmidp, cmidp), lambda b_, i_: (0, 0, 0)),                # conv2 taps
        pl.BlockSpec((1, cmidp), cst2),                                           # b2
        pl.BlockSpec((cmidp, cinp), cst2),                                        # w3 (folded)
        pl.BlockSpec((1, cinp), cst2),                                            # b3
    ]

    out = pl.pallas_call(
        kernel,
        out_shape=jax.ShapeDtypeStruct((n, h, wp, cinp), jnp.bfloat16),
        grid_spec=pltpu.PrefetchScalarGridSpec(
            num_scalar_prefetch=0,
            grid=grid,
            in_specs=in_specs,
            out_specs=pl.BlockSpec((1, tr, wp, cinp), lambda b_, i_: (b_, i_, 0, 0)),
            scratch_shapes=[pltpu.VMEM((2 * _GUARD + (tr + 2) * wp, cmidp),
                                       jnp.bfloat16)],
        ),
        compiler_params=pltpu.CompilerParams(
            dimension_semantics=("parallel", "parallel"),
            vmem_limit_bytes=vmem_limit),
    )(xpad, xpad, xpad, w1p, b1p, w2t, b2p, w3p, b3p)

    # Single interior crop (columns + channels), fused with the final transpose.
    out = out[:, :, 1:w + 1, :cin].astype(jnp.float32)
    return jnp.transpose(out, (0, 3, 1, 2))


# --------------------------- pure-JAX reference ------------------------------

def reference_forward(x, p, eps=1e-5):
    def conv(a, w, pad=0):
        return jax.lax.conv_general_dilated(
            a, w, (1, 1), [(pad, pad), (pad, pad)],
            dimension_numbers=('NCHW', 'OIHW', 'NCHW'))

    def bn(a, g, b, m, v):
        sh = (1, -1, 1, 1)
        return (a - m.reshape(sh)) / jnp.sqrt(v.reshape(sh) + eps) \
            * g.reshape(sh) + b.reshape(sh)

    o = jax.nn.relu(bn(conv(x, p['w1']), p['g1'], p['be1'], p['m1'], p['v1']))
    o = jax.nn.relu(bn(conv(o, p['w2'], pad=1),
                       p['g2'], p['be2'], p['m2'], p['v2']))
    o = bn(conv(o, p['w3']), p['g3'], p['be3'], p['m3'], p['v3'])
    return jax.nn.relu(o + x)


# ----------------------------------- main ------------------------------------

def _make_params(key, cin, cmid):
    ks = jax.random.split(key, 9)

    def bn_params(k1, k2, c):
        return (jnp.ones((c,), jnp.float32),                               # gamma
                jnp.zeros((c,), jnp.float32),                              # beta
                0.05 * jax.random.normal(k1, (c,), jnp.float32),           # running mean
                jnp.abs(jax.random.normal(k2, (c,), jnp.float32)) + 1.0)   # running var

    p = {
        'w1': 0.2 * jax.random.normal(ks[0], (cmid, cin, 1, 1), jnp.float32),
        'w2': 0.1 * jax.random.normal(ks[1], (cmid, cmid, 3, 3), jnp.float32),
        'w3': 0.2 * jax.random.normal(ks[2], (cin, cmid, 1, 1), jnp.float32),
    }
    p['g1'], p['be1'], p['m1'], p['v1'] = bn_params(ks[3], ks[4], cmid)
    p['g2'], p['be2'], p['m2'], p['v2'] = bn_params(ks[5], ks[6], cmid)
    p['g3'], p['be3'], p['m3'], p['v3'] = bn_params(ks[7], ks[8], cin)
    return p


if __name__ == "__main__":
    key = jax.random.PRNGKey(0)
    k_x, k_p = jax.random.split(key)

    # Small, ResNet-bottleneck-shaped problem: N=2, Cin=16, H=W=8, Cmid=8.
    N, CIN, H, W, CMID = 2, 16, 8, 8, 8
    x = jax.random.normal(k_x, (N, CIN, H, W), jnp.float32)
    params = _make_params(k_p, CIN, CMID)

    out = jax.block_until_ready(jax.jit(stage_forward)(x, params))
    ref = jax.block_until_ready(reference_forward(x, params))

    assert out.shape == (N, CIN, H, W)
    # bf16 operands, bf16 intermediate activations, bf16 residual/output
    # (f32 MXU accumulate) -> relaxed tolerance vs. the f32 reference.
    assert jnp.allclose(out, ref, atol=8e-2, rtol=8e-2), \
        float(jnp.max(jnp.abs(out - ref)))
    print("KERNEL_OK")
</pallas_src>

<mosaic_0001>
module attributes {stable_mosaic.version = 11 : i64} {
  func.func @_bottleneck_kernel(%arg0: i32, %arg1: i32, %arg2: memref<1x2x16x128xbf16, #tpu.memory_space<vmem>>, %arg3: memref<1x1x16x128xbf16, #tpu.memory_space<vmem>>, %arg4: memref<1x1x16x128xbf16, #tpu.memory_space<vmem>>, %arg5: memref<128x128xbf16, #tpu.memory_space<vmem>>, %arg6: memref<1x128xf32, #tpu.memory_space<vmem>>, %arg7: memref<9x128x128xbf16, #tpu.memory_space<vmem>>, %arg8: memref<1x128xf32, #tpu.memory_space<vmem>>, %arg9: memref<128x128xbf16, #tpu.memory_space<vmem>>, %arg10: memref<1x128xf32, #tpu.memory_space<vmem>>, %arg11: memref<1x2x16x128xbf16, #tpu.memory_space<vmem>>, %arg12: memref<80x128xbf16, #tpu.memory_space<vmem>>) attributes {dimension_semantics = [#tpu.dimension_semantics<parallel>, #tpu.dimension_semantics<parallel>], iteration_bounds = array<i64: 2, 4>, scalar_prefetch = 0 : i64, scratch_operands = 1 : i64, tpu.core_type = #tpu.core_type<tc>, window_params = [{transform_indices = @transform_0, window_bounds = array<i64: 1, 2, 16, 128>}, {transform_indices = @transform_1, window_bounds = array<i64: 1, 1, 16, 128>}, {transform_indices = @transform_2, window_bounds = array<i64: 1, 1, 16, 128>}, {pipeline_mode = #tpu.pipeline_mode<synchronous>, transform_indices = @transform_3, window_bounds = array<i64: 128, 128>}, {pipeline_mode = #tpu.pipeline_mode<synchronous>, transform_indices = @transform_4, window_bounds = array<i64: 1, 128>}, {pipeline_mode = #tpu.pipeline_mode<synchronous>, transform_indices = @transform_5, window_bounds = array<i64: 9, 128, 128>}, {pipeline_mode = #tpu.pipeline_mode<synchronous>, transform_indices = @transform_6, window_bounds = array<i64: 1, 128>}, {pipeline_mode = #tpu.pipeline_mode<synchronous>, transform_indices = @transform_7, window_bounds = array<i64: 128, 128>}, {pipeline_mode = #tpu.pipeline_mode<synchronous>, transform_indices = @transform_8, window_bounds = array<i64: 1, 128>}, {transform_indices = @transform_9, window_bounds = array<i64: 1, 2, 16, 128>}]} {
    %cst = arith.constant 0.000000e+00 : bf16
    %0 = vector.broadcast %cst : bf16 to vector<8x128xbf16>
    %c0 = arith.constant 0 : index
    %c0_0 = arith.constant 0 : index
    %1 = vector.load %arg12[%c0, %c0_0] : memref<80x128xbf16, #tpu.memory_space<vmem>>, vector<8x128xbf16>
    tpu.vector_store %arg12[%c0, %c0_0], %0 {strides = array<i32>} : memref<80x128xbf16, #tpu.memory_space<vmem>>, vector<8x128xbf16>,
    %cst_1 = arith.constant 0.000000e+00 : bf16
    %2 = vector.broadcast %cst_1 : bf16 to vector<8x128xbf16>
    %c72 = arith.constant 72 : index
    %c0_2 = arith.constant 0 : index
    %3 = vector.load %arg12[%c72, %c0_2] : memref<80x128xbf16, #tpu.memory_space<vmem>>, vector<8x128xbf16>
    tpu.vector_store %arg12[%c72, %c0_2], %2 {strides = array<i32>} : memref<80x128xbf16, #tpu.memory_space<vmem>>, vector<8x128xbf16>,
    %c0_3 = arith.constant 0 : index
    %c0_4 = arith.constant 0 : index
    %4 = vector.load %arg5[%c0_3, %c0_4] : memref<128x128xbf16, #tpu.memory_space<vmem>>, vector<128x128xbf16>
    %c0_5 = arith.constant 0 : index
    %c0_6 = arith.constant 0 : index
    %5 = vector.load %arg6[%c0_5, %c0_6] : memref<1x128xf32, #tpu.memory_space<vmem>>, vector<1x128xf32>
    %6 = tpu.iota {dimensions = array<i32: 0>} : vector<32x1xi32>
    %c16_i32 = arith.constant 16 : i32
    %c0_i32 = arith.constant 0 : i32
    %7 = arith.cmpi eq, %c16_i32, %c0_i32 : i32
    %c1_i32 = arith.constant 1 : i32
    %8 = arith.select %7, %c1_i32, %c16_i32 : i32
    %9 = vector.broadcast %8 : i32 to vector<32x1xi32>
    %10 = arith.remsi %6, %9 : vector<32x1xi32>
    %c0_i32_7 = arith.constant 0 : i32
    %11 = vector.broadcast %c0_i32_7 : i32 to vector<32x1xi32>
    %12 = arith.cmpi ne, %10, %11 : vector<32x1xi32>
    %c0_i32_8 = arith.constant 0 : i32
    %13 = vector.broadcast %c0_i32_8 : i32 to vector<32x1xi32>
    %14 = arith.cmpi slt, %10, %13 : vector<32x1xi32>
    %c0_i32_9 = arith.constant 0 : i32
    %15 = arith.cmpi slt, %8, %c0_i32_9 : i32
    %16 = vector.broadcast %15 : i1 to vector<32x1xi1>
    %17 = vector.broadcast %16 : vector<32x1xi1> to vector<32x1xi1>
    %18 = arith.xori %14, %17 : vector<32x1xi1>
    %19 = arith.andi %18, %12 : vector<32x1xi1>
    %20 = vector.broadcast %8 : i32 to vector<32x1xi32>
    %21 = arith.addi %10, %20 : vector<32x1xi32>
    %22 = arith.select %19, %21, %10 : vector<32x1xi1>, vector<32x1xi32>
    %c1_i32_10 = arith.constant 1 : i32
    %23 = vector.broadcast %c1_i32_10 : i32 to vector<32x1xi32>
    %24 = arith.cmpi sge, %22, %23 : vector<32x1xi32>
    %c8_i32 = arith.constant 8 : i32
    %25 = vector.broadcast %c8_i32 : i32 to vector<32x1xi32>
    %26 = arith.cmpi sle, %22, %25 : vector<32x1xi32>
    %27 = arith.andi %24, %26 : vector<32x1xi1>
    %c0_11 = arith.constant 0 : index
    %c0_12 = arith.constant 0 : index
    %c0_13 = arith.constant 0 : index
    %c0_14 = arith.constant 0 : index
    %28 = vector.load %arg2[%c0_11, %c0_12, %c0_13, %c0_14] : memref<1x2x16x128xbf16, #tpu.memory_space<vmem>>, vector<1x2x16x128xbf16>
    %29 = vector.shape_cast %28 : vector<1x2x16x128xbf16> to vector<32x128xbf16>
    %cst_15 = arith.constant dense<0.000000e+00> : vector<32x128xf32>
    %30 = tpu.matmul %29, %4, %cst_15 {dimension_numbers = #tpu.dot_dimension_numbers<[1], [0], [0], [1], [0, 0, 1, 1], [], []>} : vector<32x128xbf16>, vector<128x128xbf16>, vector<32x128xf32> -> vector<32x128xf32>
    %31 = vector.broadcast %5 : vector<1x128xf32> to vector<32x128xf32>
    %32 = arith.addf %30, %31 : vector<32x128xf32>
    %cst_16 = arith.constant 0.000000e+00 : f32
    %33 = vector.broadcast %cst_16 : f32 to vector<32x128xf32>
    %34 = arith.maximumf %32, %33 : vector<32x128xf32>
    %35 = tpu.iota {dimensions = array<i32: 0>} : vector<32x1xi32>
    %c0_i32_17 = arith.constant 0 : i32
    %36 = arith.cmpi ne, %arg1, %c0_i32_17 : i32
    %c16_i32_18 = arith.constant 16 : i32
    %37 = vector.broadcast %c16_i32_18 : i32 to vector<32x1xi32>
    %38 = arith.cmpi sge, %35, %37 : vector<32x1xi32>
    %39 = vector.broadcast %36 : i1 to vector<32x1xi1>
    %40 = arith.ori %39, %38 : vector<32x1xi1>
    %41 = arith.andi %27, %40 : vector<32x1xi1>
    %cst_19 = arith.constant 0.000000e+00 : f32
    %42 = vector.shape_cast %41 : vector<32x1xi1> to vector<32x1xi1>
    %43 = vector.broadcast %42 : vector<32x1xi1> to vector<32x128xi1>
    %44 = vector.broadcast %cst_19 : f32 to vector<32x128xf32>
    %45 = arith.select %43, %34, %44 : vector<32x128xi1>, vector<32x128xf32>
    %46 = arith.truncf %45 : vector<32x128xf32> to vector<32x128xbf16>
    %c8 = arith.constant 8 : index
    %c0_20 = arith.constant 0 : index
    %47 = vector.load %arg12[%c8, %c0_20] : memref<80x128xbf16, #tpu.memory_space<vmem>>, vector<32x128xbf16>
    tpu.vector_store %arg12[%c8, %c0_20], %46 {strides = array<i32>} : memref<80x128xbf16, #tpu.memory_space<vmem>>, vector<32x128xbf16>,
    %48 = vector.extract_strided_slice %27 {offsets = [0, 0], sizes = [16, 1], strides = [1, 1]} : vector<32x1xi1> to vector<16x1xi1>
    %c0_21 = arith.constant 0 : index
    %c0_22 = arith.constant 0 : index
    %c0_23 = arith.constant 0 : index
    %c0_24 = arith.constant 0 : index
    %49 = vector.load %arg3[%c0_21, %c0_22, %c0_23, %c0_24] : memref<1x1x16x128xbf16, #tpu.memory_space<vmem>>, vector<1x1x16x128xbf16>
    %50 = vector.shape_cast %49 : vector<1x1x16x128xbf16> to vector<16x128xbf16>
    %cst_25 = arith.constant dense<0.000000e+00> : vector<16x128xf32>
    %51 = tpu.matmul %50, %4, %cst_25 {dimension_numbers = #tpu.dot_dimension_numbers<[1], [0], [0], [1], [0, 0, 1, 1], [], []>} : vector<16x128xbf16>, vector<128x128xbf16>, vector<16x128xf32> -> vector<16x128xf32>
    %52 = vector.broadcast %5 : vector<1x128xf32> to vector<16x128xf32>
    %53 = arith.addf %51, %52 : vector<16x128xf32>
    %cst_26 = arith.constant 0.000000e+00 : f32
    %54 = vector.broadcast %cst_26 : f32 to vector<16x128xf32>
    %55 = arith.maximumf %53, %54 : vector<16x128xf32>
    %cst_27 = arith.constant 0.000000e+00 : f32
    %56 = vector.shape_cast %48 : vector<16x1xi1> to vector<16x1xi1>
    %57 = vector.broadcast %56 : vector<16x1xi1> to vector<16x128xi1>
    %58 = vector.broadcast %cst_27 : f32 to vector<16x128xf32>
    %59 = arith.select %57, %55, %58 : vector<16x128xi1>, vector<16x128xf32>
    %60 = arith.truncf %59 : vector<16x128xf32> to vector<16x128xbf16>
    %c40 = arith.constant 40 : index
    %c0_28 = arith.constant 0 : index
    %61 = vector.load %arg12[%c40, %c0_28] : memref<80x128xbf16, #tpu.memory_space<vmem>>, vector<16x128xbf16>
    tpu.vector_store %arg12[%c40, %c0_28], %60 {strides = array<i32>} : memref<80x128xbf16, #tpu.memory_space<vmem>>, vector<16x128xbf16>,
    %c0_29 = arith.constant 0 : index
    %c0_30 = arith.constant 0 : index
    %c0_31 = arith.constant 0 : index
    %c0_32 = arith.constant 0 : index
    %62 = vector.load %arg4[%c0_29, %c0_30, %c0_31, %c0_32] : memref<1x1x16x128xbf16, #tpu.memory_space<vmem>>, vector<1x1x16x128xbf16>
    %63 = vector.shape_cast %62 : vector<1x1x16x128xbf16> to vector<16x128xbf16>
    %cst_33 = arith.constant dense<0.000000e+00> : vector<16x128xf32>
    %64 = tpu.matmul %63, %4, %cst_33 {dimension_numbers = #tpu.dot_dimension_numbers<[1], [0], [0], [1], [0, 0, 1, 1], [], []>} : vector<16x128xbf16>, vector<128x128xbf16>, vector<16x128xf32> -> vector<16x128xf32>
    %65 = vector.broadcast %5 : vector<1x128xf32> to vector<16x128xf32>
    %66 = arith.addf %64, %65 : vector<16x128xf32>
    %cst_34 = arith.constant 0.000000e+00 : f32
    %67 = vector.broadcast %cst_34 : f32 to vector<16x128xf32>
    %68 = arith.maximumf %66, %67 : vector<16x128xf32>
    %c3_i32 = arith.constant 3 : i32
    %69 = arith.cmpi ne, %arg1, %c3_i32 : i32
    %70 = vector.broadcast %69 : i1 to vector<16x1xi1>
    %71 = arith.andi %48, %70 : vector<16x1xi1>
    %cst_35 = arith.constant 0.000000e+00 : f32
    %72 = vector.shape_cast %71 : vector<16x1xi1> to vector<16x1xi1>
    %73 = vector.broadcast %72 : vector<16x1xi1> to vector<16x128xi1>
    %74 = vector.broadcast %cst_35 : f32 to vector<16x128xf32>
    %75 = arith.select %73, %68, %74 : vector<16x128xi1>, vector<16x128xf32>
    %76 = arith.truncf %75 : vector<16x128xf32> to vector<16x128xbf16>
    %c56 = arith.constant 56 : index
    %c0_36 = arith.constant 0 : index
    %77 = vector.load %arg12[%c56, %c0_36] : memref<80x128xbf16, #tpu.memory_space<vmem>>, vector<16x128xbf16>
    tpu.vector_store %arg12[%c56, %c0_36], %76 {strides = array<i32>} : memref<80x128xbf16, #tpu.memory_space<vmem>>, vector<16x128xbf16>,
    %cst_37 = arith.constant 0.000000e+00 : f32
    %78 = vector.broadcast %cst_37 : f32 to vector<32x128xf32>
    %c7 = arith.constant 7 : index
    %c0_38 = arith.constant 0 : index
    %79 = vector.load %arg12[%c7, %c0_38] : memref<80x128xbf16, #tpu.memory_space<vmem>>, vector<32x128xbf16>
    %c0_39 = arith.constant 0 : index
    %c0_40 = arith.constant 0 : index
    %c0_41 = arith.constant 0 : index
    %80 = vector.load %arg7[%c0_39, %c0_40, %c0_41] : memref<9x128x128xbf16, #tpu.memory_space<vmem>>, vector<1x128x128xbf16>
    %81 = vector.shape_cast %80 : vector<1x128x128xbf16> to vector<128x128xbf16>
    %cst_42 = arith.constant dense<0.000000e+00> : vector<32x128xf32>
    %82 = tpu.matmul %79, %81, %cst_42 {dimension_numbers = #tpu.dot_dimension_numbers<[1], [0], [0], [1], [0, 0, 1, 1], [], []>} : vector<32x128xbf16>, vector<128x128xbf16>, vector<32x128xf32> -> vector<32x128xf32>
    %83 = arith.addf %78, %82 : vector<32x128xf32>
    %c8_43 = arith.constant 8 : index
    %c0_44 = arith.constant 0 : index
    %84 = vector.load %arg12[%c8_43, %c0_44] : memref<80x128xbf16, #tpu.memory_space<vmem>>, vector<32x128xbf16>
    %c1 = arith.constant 1 : index
    %c0_45 = arith.constant 0 : index
    %c0_46 = arith.constant 0 : index
    %85 = vector.load %arg7[%c1, %c0_45, %c0_46] : memref<9x128x128xbf16, #tpu.memory_space<vmem>>, vector<1x128x128xbf16>
    %86 = vector.shape_cast %85 : vector<1x128x128xbf16> to vector<128x128xbf16>
    %cst_47 = arith.constant dense<0.000000e+00> : vector<32x128xf32>
    %87 = tpu.matmul %84, %86, %cst_47 {dimension_numbers = #tpu.dot_dimension_numbers<[1], [0], [0], [1], [0, 0, 1, 1], [], []>} : vector<32x128xbf16>, vector<128x128xbf16>, vector<32x128xf32> -> vector<32x128xf32>
    %88 = arith.addf %83, %87 : vector<32x128xf32>
    %c9 = arith.constant 9 : index
    %c0_48 = arith.constant 0 : index
    %89 = vector.load %arg12[%c9, %c0_48] : memref<80x128xbf16, #tpu.memory_space<vmem>>, vector<32x128xbf16>
    %c2 = arith.constant 2 : index
    %c0_49 = arith.constant 0 : index
    %c0_50 = arith.constant 0 : index
    %90 = vector.load %arg7[%c2, %c0_49, %c0_50] : memref<9x128x128xbf16, #tpu.memory_space<vmem>>, vector<1x128x128xbf16>
    %91 = vector.shape_cast %90 : vector<1x128x128xbf16> to vector<128x128xbf16>
    %cst_51 = arith.constant dense<0.000000e+00> : vector<32x128xf32>
    %92 = tpu.matmul %89, %91, %cst_51 {dimension_numbers = #tpu.dot_dimension_numbers<[1], [0], [0], [1], [0, 0, 1, 1], [], []>} : vector<32x128xbf16>, vector<128x128xbf16>, vector<32x128xf32> -> vector<32x128xf32>
    %93 = arith.addf %88, %92 : vector<32x128xf32>
    %c23 = arith.constant 23 : index
    %c0_52 = arith.constant 0 : index
    %94 = vector.load %arg12[%c23, %c0_52] : memref<80x128xbf16, #tpu.memory_space<vmem>>, vector<32x128xbf16>
    %c3 = arith.constant 3 : index
    %c0_53 = arith.constant 0 : index
    %c0_54 = arith.constant 0 : index
    %95 = vector.load %arg7[%c3, %c0_53, %c0_54] : memref<9x128x128xbf16, #tpu.memory_space<vmem>>, vector<1x128x128xbf16>
    %96 = vector.shape_cast %95 : vector<1x128x128xbf16> to vector<128x128xbf16>
    %cst_55 = arith.constant dense<0.000000e+00> : vector<32x128xf32>
    %97 = tpu.matmul %94, %96, %cst_55 {dimension_numbers = #tpu.dot_dimension_numbers<[1], [0], [0], [1], [0, 0, 1, 1], [], []>} : vector<32x128xbf16>, vector<128x128xbf16>, vector<32x128xf32> -> vector<32x128xf32>
    %98 = arith.addf %93, %97 : vector<32x128xf32>
    %c24 = arith.constant 24 : index
    %c0_56 = arith.constant 0 : index
    %99 = vector.load %arg12[%c24, %c0_56] : memref<80x128xbf16, #tpu.memory_space<vmem>>, vector<32x128xbf16>
    %c4 = arith.constant 4 : index
    %c0_57 = arith.constant 0 : index
    %c0_58 = arith.constant 0 : index
    %100 = vector.load %arg7[%c4, %c0_57, %c0_58] : memref<9x128x128xbf16, #tpu.memory_space<vmem>>, vector<1x128x128xbf16>
    %101 = vector.shape_cast %100 : vector<1x128x128xbf16> to vector<128x128xbf16>
    %cst_59 = arith.constant dense<0.000000e+00> : vector<32x128xf32>
    %102 = tpu.matmul %99, %101, %cst_59 {dimension_numbers = #tpu.dot_dimension_numbers<[1], [0], [0], [1], [0, 0, 1, 1], [], []>} : vector<32x128xbf16>, vector<128x128xbf16>, vector<32x128xf32> -> vector<32x128xf32>
    %103 = arith.addf %98, %102 : vector<32x128xf32>
    %c25 = arith.constant 25 : index
    %c0_60 = arith.constant 0 : index
    %104 = vector.load %arg12[%c25, %c0_60] : memref<80x128xbf16, #tpu.memory_space<vmem>>, vector<32x128xbf16>
    %c5 = arith.constant 5 : index
    %c0_61 = arith.constant 0 : index
    %c0_62 = arith.constant 0 : index
    %105 = vector.load %arg7[%c5, %c0_61, %c0_62] : memref<9x128x128xbf16, #tpu.memory_space<vmem>>, vector<1x128x128xbf16>
    %106 = vector.shape_cast %105 : vector<1x128x128xbf16> to vector<128x128xbf16>
    %cst_63 = arith.constant dense<0.000000e+00> : vector<32x128xf32>
    %107 = tpu.matmul %104, %106, %cst_63 {dimension_numbers = #tpu.dot_dimension_numbers<[1], [0], [0], [1], [0, 0, 1, 1], [], []>} : vector<32x128xbf16>, vector<128x128xbf16>, vector<32x128xf32> -> vector<32x128xf32>
    %108 = arith.addf %103, %107 : vector<32x128xf32>
    %c39 = arith.constant 39 : index
    %c0_64 = arith.constant 0 : index
    %109 = vector.load %arg12[%c39, %c0_64] : memref<80x128xbf16, #tpu.memory_space<vmem>>, vector<32x128xbf16>
    %c6 = arith.constant 6 : index
    %c0_65 = arith.constant 0 : index
    %c0_66 = arith.constant 0 : index
    %110 = vector.load %arg7[%c6, %c0_65, %c0_66] : memref<9x128x128xbf16, #tpu.memory_space<vmem>>, vector<1x128x128xbf16>
    %111 = vector.shape_cast %110 : vector<1x128x128xbf16> to vector<128x128xbf16>
    %cst_67 = arith.constant dense<0.000000e+00> : vector<32x128xf32>
    %112 = tpu.matmul %109, %111, %cst_67 {dimension_numbers = #tpu.dot_dimension_numbers<[1], [0], [0], [1], [0, 0, 1, 1], [], []>} : vector<32x128xbf16>, vector<128x128xbf16>, vector<32x128xf32> -> vector<32x128xf32>
    %113 = arith.addf %108, %112 : vector<32x128xf32>
    %c40_68 = arith.constant 40 : index
    %c0_69 = arith.constant 0 : index
    %114 = vector.load %arg12[%c40_68, %c0_69] : memref<80x128xbf16, #tpu.memory_space<vmem>>, vector<32x128xbf16>
    %c7_70 = arith.constant 7 : index
    %c0_71 = arith.constant 0 : index
    %c0_72 = arith.constant 0 : index
    %115 = vector.load %arg7[%c7_70, %c0_71, %c0_72] : memref<9x128x128xbf16, #tpu.memory_space<vmem>>, vector<1x128x128xbf16>
    %116 = vector.shape_cast %115 : vector<1x128x128xbf16> to vector<128x128xbf16>
    %cst_73 = arith.constant dense<0.000000e+00> : vector<32x128xf32>
    %117 = tpu.matmul %114, %116, %cst_73 {dimension_numbers = #tpu.dot_dimension_numbers<[1], [0], [0], [1], [0, 0, 1, 1], [], []>} : vector<32x128xbf16>, vector<128x128xbf16>, vector<32x128xf32> -> vector<32x128xf32>
    %118 = arith.addf %113, %117 : vector<32x128xf32>
    %c41 = arith.constant 41 : index
    %c0_74 = arith.constant 0 : index
    %119 = vector.load %arg12[%c41, %c0_74] : memref<80x128xbf16, #tpu.memory_space<vmem>>, vector<32x128xbf16>
    %c8_75 = arith.constant 8 : index
    %c0_76 = arith.constant 0 : index
    %c0_77 = arith.constant 0 : index
    %120 = vector.load %arg7[%c8_75, %c0_76, %c0_77] : memref<9x128x128xbf16, #tpu.memory_space<vmem>>, vector<1x128x128xbf16>
    %121 = vector.shape_cast %120 : vector<1x128x128xbf16> to vector<128x128xbf16>
    %cst_78 = arith.constant dense<0.000000e+00> : vector<32x128xf32>
    %122 = tpu.matmul %119, %121, %cst_78 {dimension_numbers = #tpu.dot_dimension_numbers<[1], [0], [0], [1], [0, 0, 1, 1], [], []>} : vector<32x128xbf16>, vector<128x128xbf16>, vector<32x128xf32> -> vector<32x128xf32>
    %123 = arith.addf %118, %122 : vector<32x128xf32>
    %c0_79 = arith.constant 0 : index
    %c0_80 = arith.constant 0 : index
    %124 = vector.load %arg8[%c0_79, %c0_80] : memref<1x128xf32, #tpu.memory_space<vmem>>, vector<1x128xf32>
    %125 = vector.broadcast %124 : vector<1x128xf32> to vector<32x128xf32>
    %126 = arith.addf %123, %125 : vector<32x128xf32>
    %cst_81 = arith.constant 0.000000e+00 : f32
    %127 = vector.broadcast %cst_81 : f32 to vector<32x128xf32>
    %128 = arith.maximumf %126, %127 : vector<32x128xf32>
    %129 = arith.truncf %128 : vector<32x128xf32> to vector<32x128xbf16>
    %c0_82 = arith.constant 0 : index
    %c0_83 = arith.constant 0 : index
    %130 = vector.load %arg9[%c0_82, %c0_83] : memref<128x128xbf16, #tpu.memory_space<vmem>>, vector<128x128xbf16>
    %cst_84 = arith.constant dense<0.000000e+00> : vector<32x128xf32>
    %131 = tpu.matmul %129, %130, %cst_84 {dimension_numbers = #tpu.dot_dimension_numbers<[1], [0], [0], [1], [0, 0, 1, 1], [], []>} : vector<32x128xbf16>, vector<128x128xbf16>, vector<32x128xf32> -> vector<32x128xf32>
    %c0_85 = arith.constant 0 : index
    %c0_86 = arith.constant 0 : index
    %132 = vector.load %arg10[%c0_85, %c0_86] : memref<1x128xf32, #tpu.memory_space<vmem>>, vector<1x128xf32>
    %133 = vector.broadcast %132 : vector<1x128xf32> to vector<32x128xf32>
    %134 = arith.addf %131, %133 : vector<32x128xf32>
    %135 = vector.extract_strided_slice %134 {offsets = [0, 0], sizes = [16, 128], strides = [1, 1]} : vector<32x128xf32> to vector<16x128xf32>
    %136 = vector.extract_strided_slice %29 {offsets = [16, 0], sizes = [16, 128], strides = [1, 1]} : vector<32x128xbf16> to vector<16x128xbf16>
    %137 = arith.extf %136 : vector<16x128xbf16> to vector<16x128xf32>
    %138 = arith.addf %135, %137 : vector<16x128xf32>
    %cst_87 = arith.constant 0.000000e+00 : f32
    %139 = vector.broadcast %cst_87 : f32 to vector<16x128xf32>
    %140 = arith.maximumf %138, %139 : vector<16x128xf32>
    %141 = vector.shape_cast %140 : vector<16x128xf32> to vector<1x1x16x128xf32>
    %142 = arith.truncf %141 : vector<1x1x16x128xf32> to vector<1x1x16x128xbf16>
    %c0_88 = arith.constant 0 : index
    %c0_89 = arith.constant 0 : index
    %c0_90 = arith.constant 0 : index
    %c0_91 = arith.constant 0 : index
    %143 = vector.load %arg11[%c0_88, %c0_89, %c0_90, %c0_91] : memref<1x2x16x128xbf16, #tpu.memory_space<vmem>>, vector<1x1x16x128xbf16>
    tpu.vector_store %arg11[%c0_88, %c0_89, %c0_90, %c0_91], %142 {strides = array<i32>} : memref<1x2x16x128xbf16, #tpu.memory_space<vmem>>, vector<1x1x16x128xbf16>,
    %144 = vector.extract_strided_slice %134 {offsets = [16, 0], sizes = [16, 128], strides = [1, 1]} : vector<32x128xf32> to vector<16x128xf32>
    %145 = arith.extf %50 : vector<16x128xbf16> to vector<16x128xf32>
    %146 = arith.addf %144, %145 : vector<16x128xf32>
    %cst_92 = arith.constant 0.000000e+00 : f32
    %147 = vector.broadcast %cst_92 : f32 to vector<16x128xf32>
    %148 = arith.maximumf %146, %147 : vector<16x128xf32>
    %149 = vector.shape_cast %148 : vector<16x128xf32> to vector<1x1x16x128xf32>
    %150 = arith.truncf %149 : vector<1x1x16x128xf32> to vector<1x1x16x128xbf16>
    %c0_93 = arith.constant 0 : index
    %c1_94 = arith.constant 1 : index
    %c0_95 = arith.constant 0 : index
    %c0_96 = arith.constant 0 : index
    %151 = vector.load %arg11[%c0_93, %c1_94, %c0_95, %c0_96] : memref<1x2x16x128xbf16, #tpu.memory_space<vmem>>, vector<1x1x16x128xbf16>
    tpu.vector_store %arg11[%c0_93, %c1_94, %c0_95, %c0_96], %150 {strides = array<i32>} : memref<1x2x16x128xbf16, #tpu.memory_space<vmem>>, vector<1x1x16x128xbf16>,
    return
  }
  func.func @transform_0(%arg0: i32, %arg1: i32) -> (i32, i32, i32, i32) {
    %c0_i32 = arith.constant 0 : i32
    %c0_i32_0 = arith.constant 0 : i32
    %c0_i32_1 = arith.constant 0 : i32
    return %arg0, %arg1, %c0_i32, %c0_i32_0 : i32, i32, i32, i32
  }
  func.func @transform_1(%arg0: i32, %arg1: i32) -> (i32, i32, i32, i32) {
    %c1_i32 = arith.constant 1 : i32
    %0 = arith.addi %arg1, %c1_i32 : i32
    %c2_i32 = arith.constant 2 : i32
    %1 = arith.muli %0, %c2_i32 : i32
    %c0_i32 = arith.constant 0 : i32
    %c0_i32_0 = arith.constant 0 : i32
    %c0_i32_1 = arith.constant 0 : i32
    return %arg0, %1, %c0_i32, %c0_i32_0 : i32, i32, i32, i32
  }
  func.func @transform_2(%arg0: i32, %arg1: i32) -> (i32, i32, i32, i32) {
    %c1_i32 = arith.constant 1 : i32
    %0 = arith.addi %arg1, %c1_i32 : i32
    %c2_i32 = arith.constant 2 : i32
    %1 = arith.muli %0, %c2_i32 : i32
    %c1_i32_0 = arith.constant 1 : i32
    %2 = arith.addi %1, %c1_i32_0 : i32
    %c0_i32 = arith.constant 0 : i32
    %c0_i32_1 = arith.constant 0 : i32
    %c0_i32_2 = arith.constant 0 : i32
    return %arg0, %2, %c0_i32, %c0_i32_1 : i32, i32, i32, i32
  }
  func.func @transform_3(%arg0: i32, %arg1: i32) -> (i32, i32) {
    %c0_i32 = arith.constant 0 : i32
    %c0_i32_0 = arith.constant 0 : i32
    %c0_i32_1 = arith.constant 0 : i32
    return %c0_i32, %c0_i32_0 : i32, i32
  }
  func.func @transform_4(%arg0: i32, %arg1: i32) -> (i32, i32) {
    %c0_i32 = arith.constant 0 : i32
    %c0_i32_0 = arith.constant 0 : i32
    %c0_i32_1 = arith.constant 0 : i32
    return %c0_i32, %c0_i32_0 : i32, i32
  }
  func.func @transform_5(%arg0: i32, %arg1: i32) -> (i32, i32, i32) {
    %c0_i32 = arith.constant 0 : i32
    %c0_i32_0 = arith.constant 0 : i32
    %c0_i32_1 = arith.constant 0 : i32
    %c0_i32_2 = arith.constant 0 : i32
    return %c0_i32, %c0_i32_0, %c0_i32_1 : i32, i32, i32
  }
  func.func @transform_6(%arg0: i32, %arg1: i32) -> (i32, i32) {
    %c0_i32 = arith.constant 0 : i32
    %c0_i32_0 = arith.constant 0 : i32
    %c0_i32_1 = arith.constant 0 : i32
    return %c0_i32, %c0_i32_0 : i32, i32
  }
  func.func @transform_7(%arg0: i32, %arg1: i32) -> (i32, i32) {
    %c0_i32 = arith.constant 0 : i32
    %c0_i32_0 = arith.constant 0 : i32
    %c0_i32_1 = arith.constant 0 : i32
    return %c0_i32, %c0_i32_0 : i32, i32
  }
  func.func @transform_8(%arg0: i32, %arg1: i32) -> (i32, i32) {
    %c0_i32 = arith.constant 0 : i32
    %c0_i32_0 = arith.constant 0 : i32
    %c0_i32_1 = arith.constant 0 : i32
    return %c0_i32, %c0_i32_0 : i32, i32
  }
  func.func @transform_9(%arg0: i32, %arg1: i32) -> (i32, i32, i32, i32) {
    %c0_i32 = arith.constant 0 : i32
    %c0_i32_0 = arith.constant 0 : i32
    %c0_i32_1 = arith.constant 0 : i32
    return %arg0, %arg1, %c0_i32, %c0_i32_0 : i32, i32, i32, i32
  }
}

</mosaic_0001>

<llo_original>
// kernel: stage_forward.1
$region0: #{stage_forward.1}
  #allocation0 [shape = 'u32[]', space=smem, size = 0x4, offset = 0x4, fixed_abs, tag = 'smem constant byte address 0x4 - core index']
  #allocation1 [shape = 'u32[144,128]{1,0:T(1,128)}', space=vmem, size = 0x12000, scoped, tag = 'internal scratch']
  #allocation2 [shape = 'bf16[80,128]{1,0:T(16,128)(2,1)}', space=vmem, size = 0x5000, scoped, tag = 'scratch operand']
  %s0 = inlined_call_operand.vmem [shape: bf16[2,10,16,128], index: 0, kind: input, shape index: {}, may-alias: {0,1,2}]
  %s1 = inlined_call_operand.vmem [shape: bf16[2,10,16,128], index: 1, kind: input, shape index: {}, may-alias: {0,1,2}]
  %s2 = inlined_call_operand.vmem [shape: bf16[2,10,16,128], index: 2, kind: input, shape index: {}, may-alias: {0,1,2}]
  %s3 = inlined_call_operand.vmem [shape: bf16[128,128], index: 3, kind: input, shape index: {}]
  %s4 = inlined_call_operand.vmem [shape: f32[1,128], index: 4, kind: input, shape index: {}]
  %s5 = inlined_call_operand.vmem [shape: bf16[9,128,128], index: 5, kind: input, shape index: {}]
  %s6 = inlined_call_operand.vmem [shape: f32[1,128], index: 6, kind: input, shape index: {}]
  %s7 = inlined_call_operand.vmem [shape: bf16[128,128], index: 7, kind: input, shape index: {}]
  %s8 = inlined_call_operand.vmem [shape: f32[1,128], index: 8, kind: input, shape index: {}]
  %s9 = inlined_call_operand.vmem [shape: bf16[2,8,16,128], index: 9, kind: output, shape index: {}]
  %s10 = sld [smem:[#allocation0]]
  $region69: #{stage_forward.1} parent=0
    _
  %s12 = ssub.s32 1, %s10
  %s13 = scalar_select 0, %s12, %s10
  loop: start=0, step=1, limit=10
  $region2: #{stage_forward.1} parent=0 // loop_pre_header
    _
  $region3: #{stage_forward.1} parent=0 // loop_header
    %s15 = sphi 0, %s19
    %p16 = scmp.ge.s32.totalorder %s15, 10
    %s22 = sphi 0, %s34
    %s23 = sphi 0, %s30
    %s24 = sphi 0, %s22
    %s25 = sphi 0, %s23
    %s26 = sphi 0, %s24
    %s27 = sphi 0, %s25
    %s39 = sphi 0, %s41
    %s42 = sphi 0, %s39
    %s43 = sphi 0, %s42
    %s59 = sphi 0, %s43
    %s71 = sphi 0, %s73
    %s74 = sphi 0, %s71
    %s75 = sphi 0, %s74
    %s91 = sphi 0, %s75
    %s105 = sphi 0, %s107
    %s108 = sphi 0, %s105
    %s109 = sphi 0, %s108
    %s125 = sphi 0, %s109
    %s129 = sphi 0, %s129
    %s131 = sphi 0, %s129
    %s132 = sphi 0, %s131
    %s146 = sphi 0, %s132
    %s150 = sphi 0, %s150
    %s152 = sphi 0, %s150
    %s153 = sphi 0, %s152
    %s167 = sphi 0, %s153
    %s171 = sphi 0, %s171
    %s173 = sphi 0, %s171
    %s174 = sphi 0, %s173
    %s188 = sphi 0, %s174
    %s192 = sphi 0, %s192
    %s194 = sphi 0, %s192
    %s195 = sphi 0, %s194
    %s209 = sphi 0, %s195
    %s213 = sphi 0, %s213
    %s215 = sphi 0, %s213
    %s216 = sphi 0, %s215
    %s230 = sphi 0, %s216
    %s234 = sphi 0, %s234
    %s236 = sphi 0, %s234
    %s237 = sphi 0, %s236
    %s251 = sphi 0, %s237
    %s259 = sphi 0, %s261
    %s262 = sphi 0, %s259
    %s263 = sphi 0, %s262
    %s279 = sphi 0, %s263
  $region4: #{stage_forward.1} parent=0 // loop_header_branch
    %18 = sbr.rel (%p16) target = $region8
  $region5: #{stage_forward.1} parent=0 // loop_body
    %s20 = ssub.s32 %s15, 1
    %s21 = ssub.s32 %s15, 2
    %s28 = sadd.s32 1, %s23
    %p29 = scmp.ge.s32.totalorder %s28, 4
    %s30 = scalar_select %p29, 0, %s28
    %s31 = sadd.s32 1, %s22
    %s32 = scalar_select %p29, %s31, %s22
    %p33 = scmp.ge.s32.totalorder %s32, 2
    %s34 = scalar_select %p33, 0, %s32
    %s35 = ssub.s32 %s22, %s34
    %s36 = ssub.s32 %s23, %s30
    %s37 = sor.u32 %s35, %s36
    %p38 = scmp.eq.s32.totalorder %s37, 0
    %s40 = sadd.s32 %s39, 1
    %s41 = scalar_select %p38, %s39, %s40
    %p44 = pneg %p38
    %p45 = scmp.eq.s32.totalorder %s15, 7
    %p46 = por %p44, %p45
    %p47 = scmp.ne.s32.totalorder %s39, %s42
    %p48 = scmp.eq.s32.totalorder %s15, 0
    %p49 = por %p47, %p48
    %p50 = scmp.ne.s32.totalorder %s39, %s42
    %p51 = scmp.eq.s32.totalorder %s20, 7
    %p52 = por %p50, %p51
    %p53 = scmp.ne.s32.totalorder %s42, %s43
    %p54 = scmp.eq.s32.totalorder %s20, 0
    %p55 = por %p53, %p54
    %p56 = scmp.ne.s32.totalorder %s42, %s43
    %p57 = scmp.eq.s32.totalorder %s21, 7
    %p58 = por %p56, %p57
    %p60 = scmp.ne.s32.totalorder %s43, %s59
    %p61 = scmp.eq.s32.totalorder %s21, 0
    %p62 = por %p60, %p61
    %s63 = sadd.s32 %s23, 1
    %s64 = smul.u32 %s63, 2
    %s65 = sadd.s32 %s30, 1
    %s66 = smul.u32 %s65, 2
    %s67 = ssub.s32 %s22, %s34
    %s68 = ssub.s32 %s64, %s66
    %s69 = sor.u32 %s67, %s68
    %p70 = scmp.eq.s32.totalorder %s69, 0
    %s72 = sadd.s32 %s71, 1
    %s73 = scalar_select %p70, %s71, %s72
    %p76 = pneg %p70
    %p77 = scmp.eq.s32.totalorder %s15, 7
    %p78 = por %p76, %p77
    %p79 = scmp.ne.s32.totalorder %s71, %s74
    %p80 = scmp.eq.s32.totalorder %s15, 0
    %p81 = por %p79, %p80
    %p82 = scmp.ne.s32.totalorder %s71, %s74
    %p83 = scmp.eq.s32.totalorder %s20, 7
    %p84 = por %p82, %p83
    %p85 = scmp.ne.s32.totalorder %s74, %s75
    %p86 = scmp.eq.s32.totalorder %s20, 0
    %p87 = por %p85, %p86
    %p88 = scmp.ne.s32.totalorder %s74, %s75
    %p89 = scmp.eq.s32.totalorder %s21, 7
    %p90 = por %p88, %p89
    %p92 = scmp.ne.s32.totalorder %s75, %s91
    %p93 = scmp.eq.s32.totalorder %s21, 0
    %p94 = por %p92, %p93
    %s95 = sadd.s32 %s23, 1
    %s96 = smul.u32 %s95, 2
    %s97 = sadd.s32 %s96, 1
    %s98 = sadd.s32 %s30, 1
    %s99 = smul.u32 %s98, 2
    %s100 = sadd.s32 %s99, 1
    %s101 = ssub.s32 %s22, %s34
    %s102 = ssub.s32 %s97, %s100
    %s103 = sor.u32 %s101, %s102
    %p104 = scmp.eq.s32.totalorder %s103, 0
    %s106 = sadd.s32 %s105, 1
    %s107 = scalar_select %p104, %s105, %s106
    %p110 = pneg %p104
    %p111 = scmp.eq.s32.totalorder %s15, 7
    %p112 = por %p110, %p111
    %p113 = scmp.ne.s32.totalorder %s105, %s108
    %p114 = scmp.eq.s32.totalorder %s15, 0
    %p115 = por %p113, %p114
    %p116 = scmp.ne.s32.totalorder %s105, %s108
    %p117 = scmp.eq.s32.totalorder %s20, 7
    %p118 = por %p116, %p117
    %p119 = scmp.ne.s32.totalorder %s108, %s109
    %p120 = scmp.eq.s32.totalorder %s20, 0
    %p121 = por %p119, %p120
    %p122 = scmp.ne.s32.totalorder %s108, %s109
    %p123 = scmp.eq.s32.totalorder %s21, 7
    %p124 = por %p122, %p123
    %p126 = scmp.ne.s32.totalorder %s109, %s125
    %p127 = scmp.eq.s32.totalorder %s21, 0
    %p128 = por %p126, %p127
    %s130 = sadd.s32 %s129, 1
    %p133 = scmp.eq.s32.totalorder %s15, 7
    %p134 = scmp.ne.s32.totalorder %s129, %s131
    %p135 = scmp.eq.s32.totalorder %s15, 0
    %p136 = por %p134, %p135
    %p137 = scmp.ne.s32.totalorder %s129, %s131
    %p138 = scmp.eq.s32.totalorder %s20, 7
    %p139 = por %p137, %p138
    %p140 = scmp.ne.s32.totalorder %s131, %s132
    %p141 = scmp.eq.s32.totalorder %s20, 0
    %p142 = por %p140, %p141
    %p143 = scmp.ne.s32.totalorder %s131, %s132
    %p144 = scmp.eq.s32.totalorder %s21, 7
    %p145 = por %p143, %p144
    %p147 = scmp.ne.s32.totalorder %s132, %s146
    %p148 = scmp.eq.s32.totalorder %s21, 0
    %p149 = por %p147, %p148
    %s151 = sadd.s32 %s150, 1
    %p154 = scmp.eq.s32.totalorder %s15, 7
    %p155 = scmp.ne.s32.totalorder %s150, %s152
    %p156 = scmp.eq.s32.totalorder %s15, 0
    %p157 = por %p155, %p156
    %p158 = scmp.ne.s32.totalorder %s150, %s152
    %p159 = scmp.eq.s32.totalorder %s20, 7
    %p160 = por %p158, %p159
    %p161 = scmp.ne.s32.totalorder %s152, %s153
    %p162 = scmp.eq.s32.totalorder %s20, 0
    %p163 = por %p161, %p162
    %p164 = scmp.ne.s32.totalorder %s152, %s153
    %p165 = scmp.eq.s32.totalorder %s21, 7
    %p166 = por %p164, %p165
    %p168 = scmp.ne.s32.totalorder %s153, %s167
    %p169 = scmp.eq.s32.totalorder %s21, 0
    %p170 = por %p168, %p169
    %s172 = sadd.s32 %s171, 1
    %p175 = scmp.eq.s32.totalorder %s15, 7
    %p176 = scmp.ne.s32.totalorder %s171, %s173
    %p177 = scmp.eq.s32.totalorder %s15, 0
    %p178 = por %p176, %p177
    %p179 = scmp.ne.s32.totalorder %s171, %s173
    %p180 = scmp.eq.s32.totalorder %s20, 7
    %p181 = por %p179, %p180
    %p182 = scmp.ne.s32.totalorder %s173, %s174
    %p183 = scmp.eq.s32.totalorder %s20, 0
    %p184 = por %p182, %p183
    %p185 = scmp.ne.s32.totalorder %s173, %s174
    %p186 = scmp.eq.s32.totalorder %s21, 7
    %p187 = por %p185, %p186
    %p189 = scmp.ne.s32.totalorder %s174, %s188
    %p190 = scmp.eq.s32.totalorder %s21, 0
    %p191 = por %p189, %p190
    %s193 = sadd.s32 %s192, 1
    %p196 = scmp.eq.s32.totalorder %s15, 7
    %p197 = scmp.ne.s32.totalorder %s192, %s194
    %p198 = scmp.eq.s32.totalorder %s15, 0
    %p199 = por %p197, %p198
    %p200 = scmp.ne.s32.totalorder %s192, %s194
    %p201 = scmp.eq.s32.totalorder %s20, 7
    %p202 = por %p200, %p201
    %p203 = scmp.ne.s32.totalorder %s194, %s195
    %p204 = scmp.eq.s32.totalorder %s20, 0
    %p205 = por %p203, %p204
    %p206 = scmp.ne.s32.totalorder %s194, %s195
    %p207 = scmp.eq.s32.totalorder %s21, 7
    %p208 = por %p206, %p207
    %p210 = scmp.ne.s32.totalorder %s195, %s209
    %p211 = scmp.eq.s32.totalorder %s21, 0
    %p212 = por %p210, %p211
    %s214 = sadd.s32 %s213, 1
    %p217 = scmp.eq.s32.totalorder %s15, 7
    %p218 = scmp.ne.s32.totalorder %s213, %s215
    %p219 = scmp.eq.s32.totalorder %s15, 0
    %p220 = por %p218, %p219
    %p221 = scmp.ne.s32.totalorder %s213, %s215
    %p222 = scmp.eq.s32.totalorder %s20, 7
    %p223 = por %p221, %p222
    %p224 = scmp.ne.s32.totalorder %s215, %s216
    %p225 = scmp.eq.s32.totalorder %s20, 0
    %p226 = por %p224, %p225
    %p227 = scmp.ne.s32.totalorder %s215, %s216
    %p228 = scmp.eq.s32.totalorder %s21, 7
    %p229 = por %p227, %p228
    %p231 = scmp.ne.s32.totalorder %s216, %s230
    %p232 = scmp.eq.s32.totalorder %s21, 0
    %p233 = por %p231, %p232
    %s235 = sadd.s32 %s234, 1
    %p238 = scmp.eq.s32.totalorder %s15, 7
    %p239 = scmp.ne.s32.totalorder %s234, %s236
    %p240 = scmp.eq.s32.totalorder %s15, 0
    %p241 = por %p239, %p240
    %p242 = scmp.ne.s32.totalorder %s234, %s236
    %p243 = scmp.eq.s32.totalorder %s20, 7
    %p244 = por %p242, %p243
    %p245 = scmp.ne.s32.totalorder %s236, %s237
    %p246 = scmp.eq.s32.totalorder %s20, 0
    %p247 = por %p245, %p246
    %p248 = scmp.ne.s32.totalorder %s236, %s237
    %p249 = scmp.eq.s32.totalorder %s21, 7
    %p250 = por %p248, %p249
    %p252 = scmp.ne.s32.totalorder %s237, %s251
    %p253 = scmp.eq.s32.totalorder %s21, 0
    %p254 = por %p252, %p253
    %s255 = ssub.s32 %s22, %s34
    %s256 = ssub.s32 %s23, %s30
    %s257 = sor.u32 %s255, %s256
    %p258 = scmp.eq.s32.totalorder %s257, 0
    %s260 = sadd.s32 %s259, 1
    %s261 = scalar_select %p258, %s259, %s260
    %p264 = pneg %p258
    %p265 = scmp.eq.s32.totalorder %s15, 7
    %p266 = por %p264, %p265
    %p267 = scmp.ne.s32.totalorder %s259, %s262
    %p268 = scmp.eq.s32.totalorder %s15, 0
    %p269 = por %p267, %p268
    %p270 = scmp.ne.s32.totalorder %s259, %s262
    %p271 = scmp.eq.s32.totalorder %s20, 7
    %p272 = por %p270, %p271
    %p273 = scmp.ne.s32.totalorder %s262, %s263
    %p274 = scmp.eq.s32.totalorder %s20, 0
    %p275 = por %p273, %p274
    %p276 = scmp.ne.s32.totalorder %s262, %s263
    %p277 = scmp.eq.s32.totalorder %s21, 7
    %p278 = por %p276, %p277
    %p280 = scmp.ne.s32.totalorder %s263, %s279
    %p281 = scmp.eq.s32.totalorder %s21, 0
    %p282 = por %p280, %p281
    %p283 = scmp.le.s32.totalorder 1, %s15
    %p284 = scmp.lt.s32.totalorder %s15, 9
    %p285 = pnand %p283, %p284
    %p286 = pneg %p285
    // Predicated region
    $region9: #{stage_forward.1} parent=5 // pred_check
      _
    $region10: #{stage_forward.1} parent=5 // pred_check_branch
      %288 = sbr.rel (%p285) target = $region12
    $region11: #{stage_forward.1} parent=5 // pred_region
      %s289 = ssub.s32 %s15, 1
      // Predicated region
      $region13: #{stage_forward.1} parent=11 // pred_check
        %p290 = pneg %p142
      $region14: #{stage_forward.1} parent=11 // pred_check_branch
        %292 = sbr.rel (%p290) target = $region16
      $region15: #{stage_forward.1} parent=11 // pred_region
        _
      $region16: #{stage_forward.1} parent=11 // pred_fallthru
        _
      // Predicated region
      $region17: #{stage_forward.1} parent=11 // pred_check
        %p293 = pneg %p163
      $region18: #{stage_forward.1} parent=11 // pred_check_branch
        %295 = sbr.rel (%p293) target = $region20
      $region19: #{stage_forward.1} parent=11 // pred_region
        _
      $region20: #{stage_forward.1} parent=11 // pred_fallthru
        _
      // Predicated region
      $region21: #{stage_forward.1} parent=11 // pred_check
        %p296 = pneg %p184
      $region22: #{stage_forward.1} parent=11 // pred_check_branch
        %298 = sbr.rel (%p296) target = $region24
      $region23: #{stage_forward.1} parent=11 // pred_region
        _
      $region24: #{stage_forward.1} parent=11 // pred_fallthru
        _
      // Predicated region
      $region25: #{stage_forward.1} parent=11 // pred_check
        %p299 = pneg %p205
      $region26: #{stage_forward.1} parent=11 // pred_check_branch
        %301 = sbr.rel (%p299) target = $region28
      $region27: #{stage_forward.1} parent=11 // pred_region
        _
      $region28: #{stage_forward.1} parent=11 // pred_fallthru
        _
      // Predicated region
      $region29: #{stage_forward.1} parent=11 // pred_check
        %p302 = pneg %p226
      $region30: #{stage_forward.1} parent=11 // pred_check_branch
        %304 = sbr.rel (%p302) target = $region32
      $region31: #{stage_forward.1} parent=11 // pred_region
        _
      $region32: #{stage_forward.1} parent=11 // pred_fallthru
        _
      // Predicated region
      $region33: #{stage_forward.1} parent=11 // pred_check
        %p305 = pneg %p247
      $region34: #{stage_forward.1} parent=11 // pred_check_branch
        %307 = sbr.rel (%p305) target = $region36
      $region35: #{stage_forward.1} parent=11 // pred_region
        _
      $region36: #{stage_forward.1} parent=11 // pred_fallthru
        _
    $region12: #{stage_forward.1} parent=5 // pred_fallthru
      _
    %p308 = scmp.lt.s32.totalorder %s15, 8
    // Predicated region
    $region37: #{stage_forward.1} parent=5 // pred_check
      %p309 = pneg %p308
    $region38: #{stage_forward.1} parent=5 // pred_check_branch
      %311 = sbr.rel (%p309) target = $region40
    $region39: #{stage_forward.1} parent=5 // pred_region
      // Predicated region
      $region41: #{stage_forward.1} parent=39 // pred_check
        %p312 = pneg %p49
      $region42: #{stage_forward.1} parent=39 // pred_check_branch
        %314 = sbr.rel (%p312) target = $region44
      $region43: #{stage_forward.1} parent=39 // pred_region
        %s315 = smul.u32 2, %s23
        %p316 = scmp.lt.s32.totalorder %s22, 1
        %s317 = scalar_select %p316, %s22, 1
        %p318 = scmp.lt.s32.totalorder %s315, 9
        %s319 = scalar_select %p318, %s315, 9
        %s320 = smul.addr %s319, 2
        %s321 = smul.addr %s317, 20
        %s322 = sadd.s32 %s320, %s321
        %s323 = smul.addr %s322, 4
        %s324 = scalar_lea.vmem %s0, %s323
        %s325 = smul.u32 2, %s23
      $region44: #{stage_forward.1} parent=39 // pred_fallthru
        _
      // Predicated region
      $region45: #{stage_forward.1} parent=39 // pred_check
        %p326 = pneg %p81
      $region46: #{stage_forward.1} parent=39 // pred_check_branch
        %328 = sbr.rel (%p326) target = $region48
      $region47: #{stage_forward.1} parent=39 // pred_region
        %s329 = sadd.s32 %s23, 1
        %s330 = smul.u32 %s329, 2
        %p331 = scmp.lt.s32.totalorder %s22, 1
        %s332 = scalar_select %p331, %s22, 1
        %p333 = scmp.lt.s32.totalorder %s330, 9
        %s334 = scalar_select %p333, %s330, 9
        %s335 = smul.addr %s334, 2
        %s336 = smul.addr %s332, 20
        %s337 = sadd.s32 %s335, %s336
        %s338 = smul.addr %s337, 4
        %s339 = scalar_lea.vmem %s1, %s338
        %s340 = sadd.s32 %s23, 1
        %s341 = smul.u32 %s340, 2
      $region48: #{stage_forward.1} parent=39 // pred_fallthru
        _
      // Predicated region
      $region49: #{stage_forward.1} parent=39 // pred_check
        %p342 = pneg %p115
      $region50: #{stage_forward.1} parent=39 // pred_check_branch
        %344 = sbr.rel (%p342) target = $region52
      $region51: #{stage_forward.1} parent=39 // pred_region
        %s345 = sadd.s32 %s23, 1
        %s346 = smul.u32 %s345, 2
        %s347 = sadd.s32 %s346, 1
        %p348 = scmp.lt.s32.totalorder %s22, 1
        %s349 = scalar_select %p348, %s22, 1
        %p350 = scmp.lt.s32.totalorder %s347, 9
        %s351 = scalar_select %p350, %s347, 9
        %s352 = smul.addr %s351, 2
        %s353 = smul.addr %s349, 20
        %s354 = sadd.s32 %s352, %s353
        %s355 = smul.addr %s354, 4
        %s356 = scalar_lea.vmem %s2, %s355
        %s357 = sadd.s32 %s23, 1
        %s358 = smul.u32 %s357, 2
        %s359 = sadd.s32 %s358, 1
      $region52: #{stage_forward.1} parent=39 // pred_fallthru
        _
    $region40: #{stage_forward.1} parent=5 // pred_fallthru
      _
    %p360 = scmp.le.s32.totalorder 1, %s15
    %p361 = scmp.lt.s32.totalorder %s15, 9
    %p362 = pnand %p360, %p361
    %p363 = pneg %p362
    // Predicated region
    $region53: #{stage_forward.1} parent=5 // pred_check
      _
    $region54: #{stage_forward.1} parent=5 // pred_check_branch
      %365 = sbr.rel (%p362) target = $region56
    $region55: #{stage_forward.1} parent=5 // pred_region
      %s366 = ssub.s32 %s15, 1
      %s367 = smul.u32 2, %s25
      %p368 = scmp.lt.s32.totalorder %s24, 1
      %s369 = scalar_select %p368, %s24, 1
      %p370 = scmp.lt.s32.totalorder %s367, 9
      %s371 = scalar_select %p370, %s367, 9
      %s372 = smul.addr %s371, 2
      %s373 = smul.addr %s369, 20
      %s374 = sadd.s32 %s372, %s373
      %s375 = smul.addr %s374, 4
      %s376 = scalar_lea.vmem %s0, %s375
      %p377 = pneg %p55
      %p378 = pneg %p52
      %s379 = sadd.s32 %s25, 1
      %s380 = smul.u32 %s379, 2
      %p381 = scmp.lt.s32.totalorder %s24, 1
      %s382 = scalar_select %p381, %s24, 1
      %p383 = scmp.lt.s32.totalorder %s380, 9
      %s384 = scalar_select %p383, %s380, 9
      %s385 = smul.addr %s384, 2
      %s386 = smul.addr %s382, 20
      %s387 = sadd.s32 %s385, %s386
      %s388 = smul.addr %s387, 4
      %s389 = scalar_lea.vmem %s1, %s388
      %p390 = pneg %p87
      %p391 = pneg %p84
      %s392 = sadd.s32 %s25, 1
      %s393 = smul.u32 %s392, 2
      %s394 = sadd.s32 %s393, 1
      %p395 = scmp.lt.s32.totalorder %s24, 1
      %s396 = scalar_select %p395, %s24, 1
      %p397 = scmp.lt.s32.totalorder %s394, 9
      %s398 = scalar_select %p397, %s394, 9
      %s399 = smul.addr %s398, 2
      %s400 = smul.addr %s396, 20
      %s401 = sadd.s32 %s399, %s400
      %s402 = smul.addr %s401, 4
      %s403 = scalar_lea.vmem %s2, %s402
      %p404 = pneg %p121
      %p405 = pneg %p118
      %p406 = pneg %p142
      %p407 = pneg %p139
      %p408 = pneg %p163
      %p409 = pneg %p160
      %p410 = pneg %p184
      %p411 = pneg %p181
      %p412 = pneg %p205
      %p413 = pneg %p202
      %p414 = pneg %p226
      %p415 = pneg %p223
      %p416 = pneg %p247
      %p417 = pneg %p244
      %p418 = pneg %p275
      %p419 = pneg %p272
      %s420 = smul.u32 2, %s25
      %p421 = scmp.lt.s32.totalorder %s24, 1
      %s422 = scalar_select %p421, %s24, 1
      %p423 = scmp.lt.s32.totalorder %s420, 7
      %s424 = scalar_select %p423, %s420, 7
      %s425 = smul.addr %s424, 2
      %s426 = smul.addr %s422, 16
      %s427 = sadd.s32 %s425, %s426
      %s428 = smul.addr %s427, 4
      %s429 = scalar_lea.vmem %s9, %s428
      %s430 = smul.u32 2, %s25
      %p431 = scmp.lt.s32.totalorder %s24, 1
      %s432 = scalar_select %p431, %s24, 1
      %p433 = scmp.lt.s32.totalorder %s430, 9
      %s434 = scalar_select %p433, %s430, 9
      %s435 = smul.addr %s434, 2
      %s436 = smul.addr %s432, 20
      %s437 = sadd.s32 %s435, %s436
      %s438 = smul.addr %s437, 4
      %s439 = scalar_lea.vmem %s0, %s438
      %s440 = smul.u32 2, %s25
      %s441 = sadd.s32 %s25, 1
      %s442 = smul.u32 %s441, 2
      %p443 = scmp.lt.s32.totalorder %s24, 1
      %s444 = scalar_select %p443, %s24, 1
      %p445 = scmp.lt.s32.totalorder %s442, 9
      %s446 = scalar_select %p445, %s442, 9
      %s447 = smul.addr %s446, 2
      %s448 = smul.addr %s444, 20
      %s449 = sadd.s32 %s447, %s448
      %s450 = smul.addr %s449, 4
      %s451 = scalar_lea.vmem %s1, %s450
      %s452 = sadd.s32 %s25, 1
      %s453 = smul.u32 %s452, 2
      %s454 = sadd.s32 %s25, 1
      %s455 = smul.u32 %s454, 2
      %s456 = sadd.s32 %s455, 1
      %p457 = scmp.lt.s32.totalorder %s24, 1
      %s458 = scalar_select %p457, %s24, 1
      %p459 = scmp.lt.s32.totalorder %s456, 9
      %s460 = scalar_select %p459, %s456, 9
      %s461 = smul.addr %s460, 2
      %s462 = smul.addr %s458, 20
      %s463 = sadd.s32 %s461, %s462
      %s464 = smul.addr %s463, 4
      %s465 = scalar_lea.vmem %s2, %s464
      %s466 = sadd.s32 %s25, 1
      %s467 = smul.u32 %s466, 2
      %s468 = sadd.s32 %s467, 1
      %s469 = smul.u32 2, %s25
      %p470 = scmp.lt.s32.totalorder %s24, 1
      %s471 = scalar_select %p470, %s24, 1
      %p472 = scmp.lt.s32.totalorder %s469, 7
      %s473 = scalar_select %p472, %s469, 7
      %s474 = smul.addr %s473, 2
      %s475 = smul.addr %s471, 16
      %s476 = sadd.s32 %s474, %s475
      %s477 = smul.addr %s476, 4
      %s478 = scalar_lea.vmem %s9, %s477
      %s479 = smul.u32 2, %s25
      %481 = vst [vmem:[#allocation2] sm:$0xf] 0
      %482 = vst [vmem:[#allocation2 + $0x20] sm:$0xf0] 0
      %v483 = vld [vmem:[%s3] sm:$0xf]
      %v484 = vld [vmem:[%s3 + $0x4] sm:$0xf]
      %v485 = vld [vmem:[%s3 + $0x8] sm:$0xf]
      %v486 = vld [vmem:[%s3 + $0xc] sm:$0xf]
      %v487 = vld [vmem:[%s3 + $0x10] sm:$0xf]
      %v488 = vld [vmem:[%s3 + $0x14] sm:$0xf]
      %v489 = vld [vmem:[%s3 + $0x18] sm:$0xf]
      %v490 = vld [vmem:[%s3 + $0x1c] sm:$0xf]
      %v491 = vld [vmem:[%s3 + $0x20] sm:$0xf]
      %v492 = vld [vmem:[%s3 + $0x24] sm:$0xf]
      %v493 = vld [vmem:[%s3 + $0x28] sm:$0xf]
      %v494 = vld [vmem:[%s3 + $0x2c] sm:$0xf]
      %v495 = vld [vmem:[%s3 + $0x30] sm:$0xf]
      %v496 = vld [vmem:[%s3 + $0x34] sm:$0xf]
      %v497 = vld [vmem:[%s3 + $0x38] sm:$0xf]
      %v498 = vld [vmem:[%s3 + $0x3c] sm:$0xf]
      %v499 = vld [vmem:[%s4] sm:$0x1]
      %v500 = vlaneseq
      %v501 = vshrl.u32 %v500, 7
      %v502 = vadd.s32 %v501, 8
      %v503 = vadd.s32 %v501, 16
      %v504 = vadd.s32 %v501, 24
      %vm505 = vcmp.lt.s32.totalorder %v501, 0
      %v506 = vsub.s32 0, %v501
      %v507 = vsel %vm505, %v506, %v501
      %v508 = vshrl.u32 %v507, 4
      %v509 = vand.u32 %v507, 15
      %v510 = vsub.s32 0, %v509
      %v511 = vsel %vm505, %v510, %v509
      %vm512 = vcmp.lt.s32.totalorder %v502, 0
      %v513 = vsub.s32 0, %v502
      %v514 = vsel %vm512, %v513, %v502
      %v515 = vshrl.u32 %v514, 4
      %v516 = vand.u32 %v514, 15
      %v517 = vsub.s32 0, %v516
      %v518 = vsel %vm512, %v517, %v516
      %vm519 = vcmp.lt.s32.totalorder %v503, 0
      %v520 = vsub.s32 0, %v503
      %v521 = vsel %vm519, %v520, %v503
      %v522 = vshrl.u32 %v521, 4
      %v523 = vand.u32 %v521, 15
      %v524 = vsub.s32 0, %v523
      %v525 = vsel %vm519, %v524, %v523
      %vm526 = vcmp.lt.s32.totalorder %v504, 0
      %v527 = vsub.s32 0, %v504
      %v528 = vsel %vm526, %v527, %v504
      %v529 = vshrl.u32 %v528, 4
      %v530 = vand.u32 %v528, 15
      %v531 = vsub.s32 0, %v530
      %v532 = vsel %vm526, %v531, %v530
      %vm533 = vcmp.ne.s32.totalorder %v511, 0
      %vm534 = vcmp.ne.s32.totalorder %v518, 0
      %vm535 = vcmp.ne.s32.totalorder %v525, 0
      %vm536 = vcmp.ne.s32.totalorder %v532, 0
      %vm537 = vcmp.lt.s32.totalorder %v511, 0
      %vm538 = vcmp.lt.s32.totalorder %v518, 0
      %vm539 = vcmp.lt.s32.totalorder %v525, 0
      %vm540 = vcmp.lt.s32.totalorder %v532, 0
      %vm541 = vmand %vm537, %vm533
      %vm542 = vmand %vm538, %vm534
      %vm543 = vmand %vm539, %vm535
      %vm544 = vmand %vm540, %vm536
      %v545 = vadd.s32 %v511, 16
      %v546 = vadd.s32 %v518, 16
      %v547 = vadd.s32 %v525, 16
      %v548 = vadd.s32 %v532, 16
      %v549 = vsel %vm541, %v545, %v511
      %v550 = vsel %vm542, %v546, %v518
      %v551 = vsel %vm543, %v547, %v525
      %v552 = vsel %vm544, %v548, %v532
      %vm553 = vcmp.ge.s32.totalorder %v549, 1
      %vm554 = vcmp.ge.s32.totalorder %v550, 1
      %vm555 = vcmp.ge.s32.totalorder %v551, 1
      %vm556 = vcmp.ge.s32.totalorder %v552, 1
      %vm557 = vcmp.le.s32.totalorder %v549, 8
      %vm558 = vcmp.le.s32.totalorder %v550, 8
      %vm559 = vcmp.le.s32.totalorder %v551, 8
      %vm560 = vcmp.le.s32.totalorder %v552, 8
      %vm561 = vmand %vm553, %vm557
      %vm562 = vmand %vm554, %vm558
      %vm563 = vmand %vm555, %vm559
      %vm564 = vmand %vm556, %vm560
      %v565 = vld [vmem:[%s439] sm:$0xf]
      %v566 = vld [vmem:[%s439 + $0x4] sm:$0xf]
      %v567 = vld [vmem:[%s439 + $0x8] sm:$0xf]
      %v568 = vld [vmem:[%s439 + $0xc] sm:$0xf]
      %v570 = vlaneseq
      %v571 = vshrl.u32 %v570, 7
      %v572 = vsub.s32 0, %v571
      %v573 = vrot.slane %v499, %v572
      %v579 = vunpack.c.l.b16 %v565
      %v580 = vunpack.c.l.b16 %v566
      %v581 = vunpack.c.l.b16 %v567
      %v582 = vunpack.c.l.b16 %v568
      %v583 = vpack.c.b16 %v580, %v579
      %v584 = vpack.c.b16 %v582, %v581
      %v603 = vunpack.c.l.b16 %v483
      %v604 = vunpack.c.l.b16 %v484
      %v605 = vunpack.c.l.b16 %v485
      %v606 = vunpack.c.l.b16 %v486
      %v607 = vunpack.c.l.b16 %v487
      %v608 = vunpack.c.l.b16 %v488
      %v609 = vunpack.c.l.b16 %v489
      %v610 = vunpack.c.l.b16 %v490
      %v611 = vunpack.c.l.b16 %v491
      %v612 = vunpack.c.l.b16 %v492
      %v613 = vunpack.c.l.b16 %v493
      %v614 = vunpack.c.l.b16 %v494
      %v615 = vunpack.c.l.b16 %v495
      %v616 = vunpack.c.l.b16 %v496
      %v617 = vunpack.c.l.b16 %v497
      %v618 = vunpack.c.l.b16 %v498
      %v619 = vpack.c.b16 %v604, %v603
      %v620 = vpack.c.b16 %v606, %v605
      %v621 = vpack.c.b16 %v608, %v607
      %v622 = vpack.c.b16 %v610, %v609
      %v623 = vpack.c.b16 %v612, %v611
      %v624 = vpack.c.b16 %v614, %v613
      %v625 = vpack.c.b16 %v616, %v615
      %v626 = vpack.c.b16 %v618, %v617
      %635 = vmatprep.subr.bf16.mxu0 0
      %636 = vmatpush1.bf16.msra.mxu0 %v619
      %637 = vmatprep.subr.bf16.mxu0 0
      %638 = vmatpush1.bf16.msra.mxu0 %v620
      %639 = vmatprep.subr.bf16.mxu0 0
      %640 = vmatpush1.bf16.msra.mxu0 %v621
      %641 = vmatprep.subr.bf16.mxu0 0
      %642 = vmatpush1.bf16.msra.mxu0 %v622
      %643 = vmatprep.subr.bf16.mxu0 0
      %644 = vmatpush1.bf16.msra.mxu0 %v623
      %645 = vmatprep.subr.bf16.mxu0 0
      %646 = vmatpush1.bf16.msra.mxu0 %v624
      %647 = vmatprep.subr.bf16.mxu0 0
      %648 = vmatpush1.bf16.msra.mxu0 %v625
      %649 = vmatprep.subr.bf16.mxu0 0
      %650 = vmatpush1.bf16.msra.mxu0 %v626
      %651 = vmatprep.subr.bf16.mxu0 0
      %652 = vmatpush1.bf16.msra.mxu0 0
      %653 = vmatprep.subr.bf16.mxu0 0
      %654 = vmatpush1.bf16.msra.mxu0 0
      %655 = vmatprep.subr.bf16.mxu0 0
      %656 = vmatpush1.bf16.msra.mxu0 0
      %657 = vmatprep.subr.bf16.mxu0 0
      %658 = vmatpush1.bf16.msra.mxu0 0
      %659 = vmatprep.subr.bf16.mxu0 0
      %660 = vmatpush1.bf16.msra.mxu0 0
      %661 = vmatprep.subr.bf16.mxu0 0
      %662 = vmatpush1.bf16.msra.mxu0 0
      %663 = vmatprep.subr.bf16.mxu0 0
      %664 = vmatpush1.bf16.msra.mxu0 0
      %665 = vmatprep.subr.bf16.mxu0 0
      %666 = vmatpush1.bf16.msra.mxu0 0
      %667 = vmatprep.mubr.bf16.mxu0 0
      %668 = vmatmul.mubr.bf16.gmra.mrb[0].mxu0 %v583
      %v669 = vpop.f32.mrb[0].mxu0
      %v670 = vadd.f32 %v573, %v669
      %v671 = vpop.f32.mrb[0].mxu0
      %v672 = vpop.f32.mrb[0].mxu0
      %v673 = vadd.f32 %v573, %v672
      %v674 = vpop.f32.mrb[0].mxu0
      %675 = vmatprep.mubr.bf16.mxu0 0
      %676 = vmatmul.mubr.bf16.gmra.mrb[0].mxu0 %v584
      %v677 = vpop.f32.mrb[0].mxu0
      %v678 = vadd.f32 %v573, %v677
      %v679 = vpop.f32.mrb[0].mxu0
      %v680 = vpop.f32.mrb[0].mxu0
      %v681 = vadd.f32 %v573, %v680
      %v682 = vpop.f32.mrb[0].mxu0
      %683 = vdwg.mxu0
      %v684 = vmax.f32 %v670, 0.0
      %v685 = vmax.f32 %v673, 0.0
      %v686 = vmax.f32 %v678, 0.0
      %v687 = vmax.f32 %v681, 0.0
      %p688 = scmp.ne.s32.totalorder %s25, 0
      %vm689 = vcmp.ge.s32.totalorder %v501, 16
      %vm690 = vcmp.ge.s32.totalorder %v502, 16
      %vm691 = vcmp.ge.s32.totalorder %v503, 16
      %vm692 = vcmp.ge.s32.totalorder %v504, 16
      %s693 = scalar_select %p688, 1, 0
      %v694 = vstv %s693
      %vm695 = vcmp.eq.s32.totalorder %v694, 1
      %vm696 = vmor %vm695, %vm689
      %vm697 = vmor %vm695, %vm690
      %vm698 = vmor %vm695, %vm691
      %vm699 = vmor %vm695, %vm692
      %vm700 = vmand %vm561, %vm696
      %vm701 = vmand %vm562, %vm697
      %vm702 = vmand %vm563, %vm698
      %vm703 = vmand %vm564, %vm699
      %v704 = vsel %vm700, 1, 0
      %v705 = vsel %vm701, 1, 0
      %v706 = vsel %vm702, 1, 0
      %v707 = vsel %vm703, 1, 0
      %vm708 = vcmp.eq.s32.totalorder %v704, 1
      %vm709 = vcmp.eq.s32.totalorder %v705, 1
      %vm710 = vcmp.eq.s32.totalorder %v706, 1
      %vm711 = vcmp.eq.s32.totalorder %v707, 1
      %v712 = vsel %vm708, %v684, 0.0
      %v713 = vsel %vm709, %v685, 0.0
      %v714 = vsel %vm710, %v686, 0.0
      %v715 = vsel %vm711, %v687, 0.0
      %v716 = vpack.c.bf16 %v713, %v712
      %v717 = vpack.c.bf16 %v715, %v714
      %vm720 = vcmask 1043456
      %v721 = vrot.slane %v716, 4
      %v722 = vrot.slane %v717, 4
      %v723 = vsel %vm720, %v721, %v722
      %727 = vst [vmem:[#allocation2] sm:$0xf0] %v721
      %728 = vst [vmem:[#allocation2 + $0x8] sm:$0xff] %v723
      %729 = vst [vmem:[#allocation2 + $0x10] sm:$0xf] %v722
      %v730 = vld [vmem:[%s451] sm:$0xf]
      %v731 = vld [vmem:[%s451 + $0x4] sm:$0xf]
      %v734 = vunpack.c.l.b16 %v730
      %v735 = vunpack.c.l.b16 %v731
      %v736 = vpack.c.b16 %v735, %v734
      %738 = vmatprep.subr.bf16.mxu0 0
      %739 = vmatpush1.bf16.msra.mxu0 %v619
      %740 = vmatprep.subr.bf16.mxu0 0
      %741 = vmatpush1.bf16.msra.mxu0 %v620
      %742 = vmatprep.subr.bf16.mxu0 0
      %743 = vmatpush1.bf16.msra.mxu0 %v621
      %744 = vmatprep.subr.bf16.mxu0 0
      %745 = vmatpush1.bf16.msra.mxu0 %v622
      %746 = vmatprep.subr.bf16.mxu0 0
      %747 = vmatpush1.bf16.msra.mxu0 %v623
      %748 = vmatprep.subr.bf16.mxu0 0
      %749 = vmatpush1.bf16.msra.mxu0 %v624
      %750 = vmatprep.subr.bf16.mxu0 0
      %751 = vmatpush1.bf16.msra.mxu0 %v625
      %752 = vmatprep.subr.bf16.mxu0 0
      %753 = vmatpush1.bf16.msra.mxu0 %v626
      %754 = vmatprep.subr.bf16.mxu0 0
      %755 = vmatpush1.bf16.msra.mxu0 0
      %756 = vmatprep.subr.bf16.mxu0 0
      %757 = vmatpush1.bf16.msra.mxu0 0
      %758 = vmatprep.subr.bf16.mxu0 0
      %759 = vmatpush1.bf16.msra.mxu0 0
      %760 = vmatprep.subr.bf16.mxu0 0
      %761 = vmatpush1.bf16.msra.mxu0 0
      %762 = vmatprep.subr.bf16.mxu0 0
      %763 = vmatpush1.bf16.msra.mxu0 0
      %764 = vmatprep.subr.bf16.mxu0 0
      %765 = vmatpush1.bf16.msra.mxu0 0
      %766 = vmatprep.subr.bf16.mxu0 0
      %767 = vmatpush1.bf16.msra.mxu0 0
      %768 = vmatprep.subr.bf16.mxu0 0
      %769 = vmatpush1.bf16.msra.mxu0 0
      %770 = vmatprep.mubr.bf16.mxu0 0
      %771 = vmatmul.mubr.bf16.gmra.mrb[0].mxu0 %v736
      %v772 = vpop.f32.mrb[0].mxu0
      %v773 = vadd.f32 %v573, %v772
      %v774 = vpop.f32.mrb[0].mxu0
      %v775 = vpop.f32.mrb[0].mxu0
      %v776 = vadd.f32 %v573, %v775
      %v777 = vpop.f32.mrb[0].mxu0
      %778 = vdwg.mxu0
      %v779 = vmax.f32 %v773, 0.0
      %v780 = vmax.f32 %v776, 0.0
      %v781 = vsel %vm561, 1, 0
      %v782 = vsel %vm562, 1, 0
      %vm783 = vcmp.eq.s32.totalorder %v781, 1
      %vm784 = vcmp.eq.s32.totalorder %v782, 1
      %v785 = vsel %vm783, %v779, 0.0
      %v786 = vsel %vm784, %v780, 0.0
      %v787 = vpack.c.bf16 %v786, %v785
      %v789 = vrot.slane %v787, 4
      %791 = vst [vmem:[#allocation2 + $0x10] sm:$0xf0] %v789
      %792 = vst [vmem:[#allocation2 + $0x18] sm:$0xf] %v789
      %v793 = vld [vmem:[%s465] sm:$0xf]
      %v794 = vld [vmem:[%s465 + $0x4] sm:$0xf]
      %v797 = vunpack.c.l.b16 %v793
      %v798 = vunpack.c.l.b16 %v794
      %v799 = vpack.c.b16 %v798, %v797
      %801 = vmatprep.subr.bf16.mxu0 0
      %802 = vmatpush1.bf16.msra.mxu0 %v619
      %803 = vmatprep.subr.bf16.mxu0 0
      %804 = vmatpush1.bf16.msra.mxu0 %v620
      %805 = vmatprep.subr.bf16.mxu0 0
      %806 = vmatpush1.bf16.msra.mxu0 %v621
      %807 = vmatprep.subr.bf16.mxu0 0
      %808 = vmatpush1.bf16.msra.mxu0 %v622
      %809 = vmatprep.subr.bf16.mxu0 0
      %810 = vmatpush1.bf16.msra.mxu0 %v623
      %811 = vmatprep.subr.bf16.mxu0 0
      %812 = vmatpush1.bf16.msra.mxu0 %v624
      %813 = vmatprep.subr.bf16.mxu0 0
      %814 = vmatpush1.bf16.msra.mxu0 %v625
      %815 = vmatprep.subr.bf16.mxu0 0
      %816 = vmatpush1.bf16.msra.mxu0 %v626
      %817 = vmatprep.subr.bf16.mxu0 0
      %818 = vmatpush1.bf16.msra.mxu0 0
      %819 = vmatprep.subr.bf16.mxu0 0
      %820 = vmatpush1.bf16.msra.mxu0 0
      %821 = vmatprep.subr.bf16.mxu0 0
      %822 = vmatpush1.bf16.msra.mxu0 0
      %823 = vmatprep.subr.bf16.mxu0 0
      %824 = vmatpush1.bf16.msra.mxu0 0
      %825 = vmatprep.subr.bf16.mxu0 0
      %826 = vmatpush1.bf16.msra.mxu0 0
      %827 = vmatprep.subr.bf16.mxu0 0
      %828 = vmatpush1.bf16.msra.mxu0 0
      %829 = vmatprep.subr.bf16.mxu0 0
      %830 = vmatpush1.bf16.msra.mxu0 0
      %831 = vmatprep.subr.bf16.mxu0 0
      %832 = vmatpush1.bf16.msra.mxu0 0
      %833 = vmatprep.mubr.bf16.mxu0 0
      %834 = vmatmul.mubr.bf16.gmra.mrb[0].mxu0 %v799
      %v835 = vpop.f32.mrb[0].mxu0
      %v836 = vadd.f32 %v573, %v835
      %v837 = vpop.f32.mrb[0].mxu0
      %v838 = vpop.f32.mrb[0].mxu0
      %v839 = vadd.f32 %v573, %v838
      %v840 = vpop.f32.mrb[0].mxu0
      %841 = vdwg.mxu0
      %v842 = vmax.f32 %v836, 0.0
      %v843 = vmax.f32 %v839, 0.0
      %p844 = scmp.ne.s32.totalorder %s25, 3
      %s845 = scalar_select %p844, 1, 0
      %v846 = vstv %s845
      %vm847 = vcmp.eq.s32.totalorder %v846, 1
      %vm848 = vmand %vm561, %vm847
      %vm849 = vmand %vm562, %vm847
      %v850 = vsel %vm848, 1, 0
      %v851 = vsel %vm849, 1, 0
      %vm852 = vcmp.eq.s32.totalorder %v850, 1
      %vm853 = vcmp.eq.s32.totalorder %v851, 1
      %v854 = vsel %vm852, %v842, 0.0
      %v855 = vsel %vm853, %v843, 0.0
      %v856 = vpack.c.bf16 %v855, %v854
      %v858 = vrot.slane %v856, 4
      %860 = vst [vmem:[#allocation2 + $0x18] sm:$0xf0] %v858
      %861 = vst [vmem:[#allocation2 + $0x20] sm:$0xf] %v858
      %v862 = vld [vmem:[#allocation2] sm:$0xf8]
      %v863 = vld [vmem:[#allocation2 + $0x8] sm:$0xff]
      %v864 = vld [vmem:[#allocation2 + $0x10] sm:$0xf]
      %v865 = vld [vmem:[%s5] sm:$0xf]
      %v866 = vld [vmem:[%s5 + $0x4] sm:$0xf]
      %v867 = vld [vmem:[%s5 + $0x8] sm:$0xf]
      %v868 = vld [vmem:[%s5 + $0xc] sm:$0xf]
      %v869 = vld [vmem:[%s5 + $0x10] sm:$0xf]
      %v870 = vld [vmem:[%s5 + $0x14] sm:$0xf]
      %v871 = vld [vmem:[%s5 + $0x18] sm:$0xf]
      %v872 = vld [vmem:[%s5 + $0x1c] sm:$0xf]
      %v873 = vld [vmem:[%s5 + $0x20] sm:$0xf]
      %v874 = vld [vmem:[%s5 + $0x24] sm:$0xf]
      %v875 = vld [vmem:[%s5 + $0x28] sm:$0xf]
      %v876 = vld [vmem:[%s5 + $0x2c] sm:$0xf]
      %v877 = vld [vmem:[%s5 + $0x30] sm:$0xf]
      %v878 = vld [vmem:[%s5 + $0x34] sm:$0xf]
      %v879 = vld [vmem:[%s5 + $0x38] sm:$0xf]
      %v880 = vld [vmem:[%s5 + $0x3c] sm:$0xf]
      %v881 = vld [vmem:[#allocation2] sm:$0xf0]
      %s882 = scalar_lea.vmem %s5, 64
      %v883 = vld [vmem:[%s882] sm:$0xf]
      %v884 = vld [vmem:[%s882 + $0x4] sm:$0xf]
      %v885 = vld [vmem:[%s882 + $0x8] sm:$0xf]
      %v886 = vld [vmem:[%s882 + $0xc] sm:$0xf]
      %v887 = vld [vmem:[%s882 + $0x10] sm:$0xf]
      %v888 = vld [vmem:[%s882 + $0x14] sm:$0xf]
      %v889 = vld [vmem:[%s882 + $0x18] sm:$0xf]
      %v890 = vld [vmem:[%s882 + $0x1c] sm:$0xf]
      %v891 = vld [vmem:[%s882 + $0x20] sm:$0xf]
      %v892 = vld [vmem:[%s882 + $0x24] sm:$0xf]
      %v893 = vld [vmem:[%s882 + $0x28] sm:$0xf]
      %v894 = vld [vmem:[%s882 + $0x2c] sm:$0xf]
      %v895 = vld [vmem:[%s882 + $0x30] sm:$0xf]
      %v896 = vld [vmem:[%s882 + $0x34] sm:$0xf]
      %v897 = vld [vmem:[%s882 + $0x38] sm:$0xf]
      %v898 = vld [vmem:[%s882 + $0x3c] sm:$0xf]
      %v902 = vrot.slane %v881, 4
      %v903 = vrot.slane %v863, 4
      %v904 = vsel %vm720, %v902, %v903
      %v905 = vrot.slane %v864, 4
      %v906 = vsel %vm720, %v903, %v905
      %v925 = vunpack.c.l.b16 %v883
      %v926 = vunpack.c.l.b16 %v884
      %v927 = vunpack.c.l.b16 %v885
      %v928 = vunpack.c.l.b16 %v886
      %v929 = vunpack.c.l.b16 %v887
      %v930 = vunpack.c.l.b16 %v888
      %v931 = vunpack.c.l.b16 %v889
      %v932 = vunpack.c.l.b16 %v890
      %v933 = vunpack.c.l.b16 %v891
      %v934 = vunpack.c.l.b16 %v892
      %v935 = vunpack.c.l.b16 %v893
      %v936 = vunpack.c.l.b16 %v894
      %v937 = vunpack.c.l.b16 %v895
      %v938 = vunpack.c.l.b16 %v896
      %v939 = vunpack.c.l.b16 %v897
      %v940 = vunpack.c.l.b16 %v898
      %v941 = vpack.c.b16 %v926, %v925
      %v942 = vpack.c.b16 %v928, %v927
      %v943 = vpack.c.b16 %v930, %v929
      %v944 = vpack.c.b16 %v932, %v931
      %v945 = vpack.c.b16 %v934, %v933
      %v946 = vpack.c.b16 %v936, %v935
      %v947 = vpack.c.b16 %v938, %v937
      %v948 = vpack.c.b16 %v940, %v939
      %957 = vmatprep.subr.bf16.mxu0 0
      %958 = vmatpush1.bf16.msra.mxu0 %v941
      %959 = vmatprep.subr.bf16.mxu0 0
      %960 = vmatpush1.bf16.msra.mxu0 %v942
      %961 = vmatprep.subr.bf16.mxu0 0
      %962 = vmatpush1.bf16.msra.mxu0 %v943
      %963 = vmatprep.subr.bf16.mxu0 0
      %964 = vmatpush1.bf16.msra.mxu0 %v944
      %965 = vmatprep.subr.bf16.mxu0 0
      %966 = vmatpush1.bf16.msra.mxu0 %v945
      %967 = vmatprep.subr.bf16.mxu0 0
      %968 = vmatpush1.bf16.msra.mxu0 %v946
      %969 = vmatprep.subr.bf16.mxu0 0
      %970 = vmatpush1.bf16.msra.mxu0 %v947
      %971 = vmatprep.subr.bf16.mxu0 0
      %972 = vmatpush1.bf16.msra.mxu0 %v948
      %973 = vmatprep.subr.bf16.mxu0 0
      %974 = vmatpush1.bf16.msra.mxu0 0
      %975 = vmatprep.subr.bf16.mxu0 0
      %976 = vmatpush1.bf16.msra.mxu0 0
      %977 = vmatprep.subr.bf16.mxu0 0
      %978 = vmatpush1.bf16.msra.mxu0 0
      %979 = vmatprep.subr.bf16.mxu0 0
      %980 = vmatpush1.bf16.msra.mxu0 0
      %981 = vmatprep.subr.bf16.mxu0 0
      %982 = vmatpush1.bf16.msra.mxu0 0
      %983 = vmatprep.subr.bf16.mxu0 0
      %984 = vmatpush1.bf16.msra.mxu0 0
      %985 = vmatprep.subr.bf16.mxu0 0
      %986 = vmatpush1.bf16.msra.mxu0 0
      %987 = vmatprep.subr.bf16.mxu0 0
      %988 = vmatpush1.bf16.msra.mxu0 0
      %989 = vmatprep.mubr.bf16.mxu0 0
      %990 = vmatmul.mubr.bf16.gmra.mrb[0].mxu0 %v904
      %v991 = vpop.f32.mrb[0].mxu0
      %v992 = vadd.f32 0.0, %v991
      %v993 = vpop.f32.mrb[0].mxu0
      %v994 = vpop.f32.mrb[0].mxu0
      %v995 = vadd.f32 0.0, %v994
      %v996 = vpop.f32.mrb[0].mxu0
      %997 = vmatprep.mubr.bf16.mxu0 0
      %998 = vmatmul.mubr.bf16.gmra.mrb[0].mxu0 %v906
      %v999 = vpop.f32.mrb[0].mxu0
      %v1000 = vadd.f32 0.0, %v999
      %v1001 = vpop.f32.mrb[0].mxu0
      %v1002 = vpop.f32.mrb[0].mxu0
      %v1003 = vadd.f32 0.0, %v1002
      %v1004 = vpop.f32.mrb[0].mxu0
      %1005 = vdwg.mxu0
      %vm1006 = vsmask.f32 4352
      %v1008 = vshrl.u32 %v862, 16
      %v1010 = vrot.slane %v1008, 3
      %v1011 = vshll.u32 %v862, 16
      %v1013 = vrot.slane %v1011, 4
      %v1014 = vor.u32 %v1010, %v1013
      %v1016 = vshrl.u32 %v863, 16
      %v1018 = vrot.slane %v1016, 3
      %v1019 = vshll.u32 %v863, 16
      %v1021 = vrot.slane %v1019, 4
      %v1022 = vor.u32 %v1018, %v1021
      %v1023 = vsel %vm1006, %v1014, %v1022
      %v1025 = vshrl.u32 %v864, 16
      %v1027 = vrot.slane %v1025, 3
      %v1028 = vshll.u32 %v864, 16
      %v1030 = vrot.slane %v1028, 4
      %v1031 = vor.u32 %v1027, %v1030
      %v1032 = vsel %vm1006, %v1022, %v1031
      %v1051 = vunpack.c.l.b16 %v865
      %v1052 = vunpack.c.l.b16 %v866
      %v1053 = vunpack.c.l.b16 %v867
      %v1054 = vunpack.c.l.b16 %v868
      %v1055 = vunpack.c.l.b16 %v869
      %v1056 = vunpack.c.l.b16 %v870
      %v1057 = vunpack.c.l.b16 %v871
      %v1058 = vunpack.c.l.b16 %v872
      %v1059 = vunpack.c.l.b16 %v873
      %v1060 = vunpack.c.l.b16 %v874
      %v1061 = vunpack.c.l.b16 %v875
      %v1062 = vunpack.c.l.b16 %v876
      %v1063 = vunpack.c.l.b16 %v877
      %v1064 = vunpack.c.l.b16 %v878
      %v1065 = vunpack.c.l.b16 %v879
      %v1066 = vunpack.c.l.b16 %v880
      %v1067 = vpack.c.b16 %v1052, %v1051
      %v1068 = vpack.c.b16 %v1054, %v1053
      %v1069 = vpack.c.b16 %v1056, %v1055
      %v1070 = vpack.c.b16 %v1058, %v1057
      %v1071 = vpack.c.b16 %v1060, %v1059
      %v1072 = vpack.c.b16 %v1062, %v1061
      %v1073 = vpack.c.b16 %v1064, %v1063
      %v1074 = vpack.c.b16 %v1066, %v1065
      %1083 = vmatprep.subr.bf16.mxu0 0
      %1084 = vmatpush1.bf16.msra.mxu0 %v1067
      %1085 = vmatprep.subr.bf16.mxu0 0
      %1086 = vmatpush1.bf16.msra.mxu0 %v1068
      %1087 = vmatprep.subr.bf16.mxu0 0
      %1088 = vmatpush1.bf16.msra.mxu0 %v1069
      %1089 = vmatprep.subr.bf16.mxu0 0
      %1090 = vmatpush1.bf16.msra.mxu0 %v1070
      %1091 = vmatprep.subr.bf16.mxu0 0
      %1092 = vmatpush1.bf16.msra.mxu0 %v1071
      %1093 = vmatprep.subr.bf16.mxu0 0
      %1094 = vmatpush1.bf16.msra.mxu0 %v1072
      %1095 = vmatprep.subr.bf16.mxu0 0
      %1096 = vmatpush1.bf16.msra.mxu0 %v1073
      %1097 = vmatprep.subr.bf16.mxu0 0
      %1098 = vmatpush1.bf16.msra.mxu0 %v1074
      %1099 = vmatprep.subr.bf16.mxu0 0
      %1100 = vmatpush1.bf16.msra.mxu0 0
      %1101 = vmatprep.subr.bf16.mxu0 0
      %1102 = vmatpush1.bf16.msra.mxu0 0
      %1103 = vmatprep.subr.bf16.mxu0 0
      %1104 = vmatpush1.bf16.msra.mxu0 0
      %1105 = vmatprep.subr.bf16.mxu0 0
      %1106 = vmatpush1.bf16.msra.mxu0 0
      %1107 = vmatprep.subr.bf16.mxu0 0
      %1108 = vmatpush1.bf16.msra.mxu0 0
      %1109 = vmatprep.subr.bf16.mxu0 0
      %1110 = vmatpush1.bf16.msra.mxu0 0
      %1111 = vmatprep.subr.bf16.mxu0 0
      %1112 = vmatpush1.bf16.msra.mxu0 0
      %1113 = vmatprep.subr.bf16.mxu0 0
      %1114 = vmatpush1.bf16.msra.mxu0 0
      %1115 = vmatprep.mubr.bf16.mxu0 0
      %1116 = vmatmul.mubr.bf16.gmra.mrb[0].mxu0 %v1023
      %v1117 = vpop.f32.mrb[0].mxu0
      %v1118 = vadd.f32 %v992, %v1117
      %v1119 = vpop.f32.mrb[0].mxu0
      %v1120 = vpop.f32.mrb[0].mxu0
      %v1121 = vadd.f32 %v995, %v1120
      %v1122 = vpop.f32.mrb[0].mxu0
      %1123 = vmatprep.mubr.bf16.mxu0 0
      %1124 = vmatmul.mubr.bf16.gmra.mrb[0].mxu0 %v1032
      %v1125 = vpop.f32.mrb[0].mxu0
      %v1126 = vadd.f32 %v1000, %v1125
      %v1127 = vpop.f32.mrb[0].mxu0
      %v1128 = vpop.f32.mrb[0].mxu0
      %v1129 = vadd.f32 %v1003, %v1128
      %v1130 = vpop.f32.mrb[0].mxu0
      %1131 = vdwg.mxu0
      %v1132 = vld [vmem:[#allocation2 + $0x10] sm:$0x1f]
      %s1133 = scalar_lea.vmem %s5, 128
      %v1134 = vld [vmem:[%s1133] sm:$0xf]
      %v1135 = vld [vmem:[%s1133 + $0x4] sm:$0xf]
      %v1136 = vld [vmem:[%s1133 + $0x8] sm:$0xf]
      %v1137 = vld [vmem:[%s1133 + $0xc] sm:$0xf]
      %v1138 = vld [vmem:[%s1133 + $0x10] sm:$0xf]
      %v1139 = vld [vmem:[%s1133 + $0x14] sm:$0xf]
      %v1140 = vld [vmem:[%s1133 + $0x18] sm:$0xf]
      %v1141 = vld [vmem:[%s1133 + $0x1c] sm:$0xf]
      %v1142 = vld [vmem:[%s1133 + $0x20] sm:$0xf]
      %v1143 = vld [vmem:[%s1133 + $0x24] sm:$0xf]
      %v1144 = vld [vmem:[%s1133 + $0x28] sm:$0xf]
      %v1145 = vld [vmem:[%s1133 + $0x2c] sm:$0xf]
      %v1146 = vld [vmem:[%s1133 + $0x30] sm:$0xf]
      %v1147 = vld [vmem:[%s1133 + $0x34] sm:$0xf]
      %v1148 = vld [vmem:[%s1133 + $0x38] sm:$0xf]
      %v1149 = vld [vmem:[%s1133 + $0x3c] sm:$0xf]
      %vm1150 = vsmask.f32 3328
      %v1152 = vshrl.u32 %v881, 16
      %v1154 = vrot.slane %v1152, 4
      %v1155 = vshll.u32 %v881, 16
      %v1157 = vrot.slane %v1155, 5
      %v1158 = vor.u32 %v1154, %v1157
      %v1159 = vrot.slane %v1016, 4
      %v1160 = vrot.slane %v1019, 5
      %v1161 = vor.u32 %v1159, %v1160
      %v1162 = vsel %vm1150, %v1158, %v1161
      %v1164 = vshrl.u32 %v1132, 16
      %v1166 = vrot.slane %v1164, 4
      %v1167 = vshll.u32 %v1132, 16
      %v1169 = vrot.slane %v1167, 5
      %v1170 = vor.u32 %v1166, %v1169
      %v1171 = vsel %vm1150, %v1161, %v1170
      %v1190 = vunpack.c.l.b16 %v1134
      %v1191 = vunpack.c.l.b16 %v1135
      %v1192 = vunpack.c.l.b16 %v1136
      %v1193 = vunpack.c.l.b16 %v1137
      %v1194 = vunpack.c.l.b16 %v1138
      %v1195 = vunpack.c.l.b16 %v1139
      %v1196 = vunpack.c.l.b16 %v1140
      %v1197 = vunpack.c.l.b16 %v1141
      %v1198 = vunpack.c.l.b16 %v1142
      %v1199 = vunpack.c.l.b16 %v1143
      %v1200 = vunpack.c.l.b16 %v1144
      %v1201 = vunpack.c.l.b16 %v1145
      %v1202 = vunpack.c.l.b16 %v1146
      %v1203 = vunpack.c.l.b16 %v1147
      %v1204 = vunpack.c.l.b16 %v1148
      %v1205 = vunpack.c.l.b16 %v1149
      %v1206 = vpack.c.b16 %v1191, %v1190
      %v1207 = vpack.c.b16 %v1193, %v1192
      %v1208 = vpack.c.b16 %v1195, %v1194
      %v1209 = vpack.c.b16 %v1197, %v1196
      %v1210 = vpack.c.b16 %v1199, %v1198
      %v1211 = vpack.c.b16 %v1201, %v1200
      %v1212 = vpack.c.b16 %v1203, %v1202
      %v1213 = vpack.c.b16 %v1205, %v1204
      %1222 = vmatprep.subr.bf16.mxu0 0
      %1223 = vmatpush1.bf16.msra.mxu0 %v1206
      %1224 = vmatprep.subr.bf16.mxu0 0
      %1225 = vmatpush1.bf16.msra.mxu0 %v1207
      %1226 = vmatprep.subr.bf16.mxu0 0
      %1227 = vmatpush1.bf16.msra.mxu0 %v1208
      %1228 = vmatprep.subr.bf16.mxu0 0
      %1229 = vmatpush1.bf16.msra.mxu0 %v1209
      %1230 = vmatprep.subr.bf16.mxu0 0
      %1231 = vmatpush1.bf16.msra.mxu0 %v1210
      %1232 = vmatprep.subr.bf16.mxu0 0
      %1233 = vmatpush1.bf16.msra.mxu0 %v1211
      %1234 = vmatprep.subr.bf16.mxu0 0
      %1235 = vmatpush1.bf16.msra.mxu0 %v1212
      %1236 = vmatprep.subr.bf16.mxu0 0
      %1237 = vmatpush1.bf16.msra.mxu0 %v1213
      %1238 = vmatprep.subr.bf16.mxu0 0
      %1239 = vmatpush1.bf16.msra.mxu0 0
      %1240 = vmatprep.subr.bf16.mxu0 0
      %1241 = vmatpush1.bf16.msra.mxu0 0
      %1242 = vmatprep.subr.bf16.mxu0 0
      %1243 = vmatpush1.bf16.msra.mxu0 0
      %1244 = vmatprep.subr.bf16.mxu0 0
      %1245 = vmatpush1.bf16.msra.mxu0 0
      %1246 = vmatprep.subr.bf16.mxu0 0
      %1247 = vmatpush1.bf16.msra.mxu0 0
      %1248 = vmatprep.subr.bf16.mxu0 0
      %1249 = vmatpush1.bf16.msra.mxu0 0
      %1250 = vmatprep.subr.bf16.mxu0 0
      %1251 = vmatpush1.bf16.msra.mxu0 0
      %1252 = vmatprep.subr.bf16.mxu0 0
      %1253 = vmatpush1.bf16.msra.mxu0 0
      %1254 = vmatprep.mubr.bf16.mxu0 0
      %1255 = vmatmul.mubr.bf16.gmra.mrb[0].mxu0 %v1162
      %v1256 = vpop.f32.mrb[0].mxu0
      %v1257 = vadd.f32 0.0, %v1256
      %v1258 = vpop.f32.mrb[0].mxu0
      %v1259 = vpop.f32.mrb[0].mxu0
      %v1260 = vadd.f32 0.0, %v1259
      %v1261 = vpop.f32.mrb[0].mxu0
      %1262 = vmatprep.mubr.bf16.mxu0 0
      %1263 = vmatmul.mubr.bf16.gmra.mrb[0].mxu0 %v1171
      %v1264 = vpop.f32.mrb[0].mxu0
      %v1265 = vadd.f32 0.0, %v1264
      %v1266 = vpop.f32.mrb[0].mxu0
      %v1267 = vpop.f32.mrb[0].mxu0
      %v1268 = vadd.f32 0.0, %v1267
      %v1269 = vpop.f32.mrb[0].mxu0
      %1270 = vdwg.mxu0
      %v1271 = vadd.f32 %v1118, %v1257
      %v1272 = vadd.f32 %v1121, %v1260
      %v1273 = vadd.f32 %v1126, %v1265
      %v1274 = vadd.f32 %v1129, %v1268
      %v1275 = vld [vmem:[#allocation2 + $0x8] sm:$0xf8]
      %v1276 = vld [vmem:[#allocation2 + $0x10] sm:$0xff]
      %v1277 = vld [vmem:[#allocation2 + $0x18] sm:$0xf]
      %s1278 = scalar_lea.vmem %s5, 192
      %v1279 = vld [vmem:[%s1278] sm:$0xf]
      %v1280 = vld [vmem:[%s1278 + $0x4] sm:$0xf]
      %v1281 = vld [vmem:[%s1278 + $0x8] sm:$0xf]
      %v1282 = vld [vmem:[%s1278 + $0xc] sm:$0xf]
      %v1283 = vld [vmem:[%s1278 + $0x10] sm:$0xf]
      %v1284 = vld [vmem:[%s1278 + $0x14] sm:$0xf]
      %v1285 = vld [vmem:[%s1278 + $0x18] sm:$0xf]
      %v1286 = vld [vmem:[%s1278 + $0x1c] sm:$0xf]
      %v1287 = vld [vmem:[%s1278 + $0x20] sm:$0xf]
      %v1288 = vld [vmem:[%s1278 + $0x24] sm:$0xf]
      %v1289 = vld [vmem:[%s1278 + $0x28] sm:$0xf]
      %v1290 = vld [vmem:[%s1278 + $0x2c] sm:$0xf]
      %v1291 = vld [vmem:[%s1278 + $0x30] sm:$0xf]
      %v1292 = vld [vmem:[%s1278 + $0x34] sm:$0xf]
      %v1293 = vld [vmem:[%s1278 + $0x38] sm:$0xf]
      %v1294 = vld [vmem:[%s1278 + $0x3c] sm:$0xf]
      %v1296 = vshrl.u32 %v1275, 16
      %v1298 = vrot.slane %v1296, 3
      %v1299 = vshll.u32 %v1275, 16
      %v1301 = vrot.slane %v1299, 4
      %v1302 = vor.u32 %v1298, %v1301
      %v1304 = vshrl.u32 %v1276, 16
      %v1306 = vrot.slane %v1304, 3
      %v1307 = vshll.u32 %v1276, 16
      %v1309 = vrot.slane %v1307, 4
      %v1310 = vor.u32 %v1306, %v1309
      %v1311 = vsel %vm1006, %v1302, %v1310
      %v1313 = vshrl.u32 %v1277, 16
      %v1315 = vrot.slane %v1313, 3
      %v1316 = vshll.u32 %v1277, 16
      %v1318 = vrot.slane %v1316, 4
      %v1319 = vor.u32 %v1315, %v1318
      %v1320 = vsel %vm1006, %v1310, %v1319
      %v1339 = vunpack.c.l.b16 %v1279
      %v1340 = vunpack.c.l.b16 %v1280
      %v1341 = vunpack.c.l.b16 %v1281
      %v1342 = vunpack.c.l.b16 %v1282
      %v1343 = vunpack.c.l.b16 %v1283
      %v1344 = vunpack.c.l.b16 %v1284
      %v1345 = vunpack.c.l.b16 %v1285
      %v1346 = vunpack.c.l.b16 %v1286
      %v1347 = vunpack.c.l.b16 %v1287
      %v1348 = vunpack.c.l.b16 %v1288
      %v1349 = vunpack.c.l.b16 %v1289
      %v1350 = vunpack.c.l.b16 %v1290
      %v1351 = vunpack.c.l.b16 %v1291
      %v1352 = vunpack.c.l.b16 %v1292
      %v1353 = vunpack.c.l.b16 %v1293
      %v1354 = vunpack.c.l.b16 %v1294
      %v1355 = vpack.c.b16 %v1340, %v1339
      %v1356 = vpack.c.b16 %v1342, %v1341
      %v1357 = vpack.c.b16 %v1344, %v1343
      %v1358 = vpack.c.b16 %v1346, %v1345
      %v1359 = vpack.c.b16 %v1348, %v1347
      %v1360 = vpack.c.b16 %v1350, %v1349
      %v1361 = vpack.c.b16 %v1352, %v1351
      %v1362 = vpack.c.b16 %v1354, %v1353
      %1371 = vmatprep.subr.bf16.mxu0 0
      %1372 = vmatpush1.bf16.msra.mxu0 %v1355
      %1373 = vmatprep.subr.bf16.mxu0 0
      %1374 = vmatpush1.bf16.msra.mxu0 %v1356
      %1375 = vmatprep.subr.bf16.mxu0 0
      %1376 = vmatpush1.bf16.msra.mxu0 %v1357
      %1377 = vmatprep.subr.bf16.mxu0 0
      %1378 = vmatpush1.bf16.msra.mxu0 %v1358
      %1379 = vmatprep.subr.bf16.mxu0 0
      %1380 = vmatpush1.bf16.msra.mxu0 %v1359
      %1381 = vmatprep.subr.bf16.mxu0 0
      %1382 = vmatpush1.bf16.msra.mxu0 %v1360
      %1383 = vmatprep.subr.bf16.mxu0 0
      %1384 = vmatpush1.bf16.msra.mxu0 %v1361
      %1385 = vmatprep.subr.bf16.mxu0 0
      %1386 = vmatpush1.bf16.msra.mxu0 %v1362
      %1387 = vmatprep.subr.bf16.mxu0 0
      %1388 = vmatpush1.bf16.msra.mxu0 0
      %1389 = vmatprep.subr.bf16.mxu0 0
      %1390 = vmatpush1.bf16.msra.mxu0 0
      %1391 = vmatprep.subr.bf16.mxu0 0
      %1392 = vmatpush1.bf16.msra.mxu0 0
      %1393 = vmatprep.subr.bf16.mxu0 0
      %1394 = vmatpush1.bf16.msra.mxu0 0
      %1395 = vmatprep.subr.bf16.mxu0 0
      %1396 = vmatpush1.bf16.msra.mxu0 0
      %1397 = vmatprep.subr.bf16.mxu0 0
      %1398 = vmatpush1.bf16.msra.mxu0 0
      %1399 = vmatprep.subr.bf16.mxu0 0
      %1400 = vmatpush1.bf16.msra.mxu0 0
      %1401 = vmatprep.subr.bf16.mxu0 0
      %1402 = vmatpush1.bf16.msra.mxu0 0
      %1403 = vmatprep.mubr.bf16.mxu0 0
      %1404 = vmatmul.mubr.bf16.gmra.mrb[0].mxu0 %v1311
      %v1405 = vpop.f32.mrb[0].mxu0
      %v1406 = vadd.f32 0.0, %v1405
      %v1407 = vpop.f32.mrb[0].mxu0
      %v1408 = vpop.f32.mrb[0].mxu0
      %v1409 = vadd.f32 0.0, %v1408
      %v1410 = vpop.f32.mrb[0].mxu0
      %1411 = vmatprep.mubr.bf16.mxu0 0
      %1412 = vmatmul.mubr.bf16.gmra.mrb[0].mxu0 %v1320
      %v1413 = vpop.f32.mrb[0].mxu0
      %v1414 = vadd.f32 0.0, %v1413
      %v1415 = vpop.f32.mrb[0].mxu0
      %v1416 = vpop.f32.mrb[0].mxu0
      %v1417 = vadd.f32 0.0, %v1416
      %v1418 = vpop.f32.mrb[0].mxu0
      %1419 = vdwg.mxu0
      %v1420 = vadd.f32 %v1271, %v1406
      %v1421 = vadd.f32 %v1272, %v1409
      %v1422 = vadd.f32 %v1273, %v1414
      %v1423 = vadd.f32 %v1274, %v1417
      %v1424 = vld [vmem:[#allocation2 + $0x8] sm:$0xf0]
      %s1425 = scalar_lea.vmem %s5, 256
      %v1426 = vld [vmem:[%s1425] sm:$0xf]
      %v1427 = vld [vmem:[%s1425 + $0x4] sm:$0xf]
      %v1428 = vld [vmem:[%s1425 + $0x8] sm:$0xf]
      %v1429 = vld [vmem:[%s1425 + $0xc] sm:$0xf]
      %v1430 = vld [vmem:[%s1425 + $0x10] sm:$0xf]
      %v1431 = vld [vmem:[%s1425 + $0x14] sm:$0xf]
      %v1432 = vld [vmem:[%s1425 + $0x18] sm:$0xf]
      %v1433 = vld [vmem:[%s1425 + $0x1c] sm:$0xf]
      %v1434 = vld [vmem:[%s1425 + $0x20] sm:$0xf]
      %v1435 = vld [vmem:[%s1425 + $0x24] sm:$0xf]
      %v1436 = vld [vmem:[%s1425 + $0x28] sm:$0xf]
      %v1437 = vld [vmem:[%s1425 + $0x2c] sm:$0xf]
      %v1438 = vld [vmem:[%s1425 + $0x30] sm:$0xf]
      %v1439 = vld [vmem:[%s1425 + $0x34] sm:$0xf]
      %v1440 = vld [vmem:[%s1425 + $0x38] sm:$0xf]
      %v1441 = vld [vmem:[%s1425 + $0x3c] sm:$0xf]
      %v1445 = vrot.slane %v1424, 4
      %v1446 = vrot.slane %v1276, 4
      %v1447 = vsel %vm720, %v1445, %v1446
      %v1448 = vrot.slane %v1277, 4
      %v1449 = vsel %vm720, %v1446, %v1448
      %v1468 = vunpack.c.l.b16 %v1426
      %v1469 = vunpack.c.l.b16 %v1427
      %v1470 = vunpack.c.l.b16 %v1428
      %v1471 = vunpack.c.l.b16 %v1429
      %v1472 = vunpack.c.l.b16 %v1430
      %v1473 = vunpack.c.l.b16 %v1431
      %v1474 = vunpack.c.l.b16 %v1432
      %v1475 = vunpack.c.l.b16 %v1433
      %v1476 = vunpack.c.l.b16 %v1434
      %v1477 = vunpack.c.l.b16 %v1435
      %v1478 = vunpack.c.l.b16 %v1436
      %v1479 = vunpack.c.l.b16 %v1437
      %v1480 = vunpack.c.l.b16 %v1438
      %v1481 = vunpack.c.l.b16 %v1439
      %v1482 = vunpack.c.l.b16 %v1440
      %v1483 = vunpack.c.l.b16 %v1441
      %v1484 = vpack.c.b16 %v1469, %v1468
      %v1485 = vpack.c.b16 %v1471, %v1470
      %v1486 = vpack.c.b16 %v1473, %v1472
      %v1487 = vpack.c.b16 %v1475, %v1474
      %v1488 = vpack.c.b16 %v1477, %v1476
      %v1489 = vpack.c.b16 %v1479, %v1478
      %v1490 = vpack.c.b16 %v1481, %v1480
      %v1491 = vpack.c.b16 %v1483, %v1482
      %1500 = vmatprep.subr.bf16.mxu0 0
      %1501 = vmatpush1.bf16.msra.mxu0 %v1484
      %1502 = vmatprep.subr.bf16.mxu0 0
      %1503 = vmatpush1.bf16.msra.mxu0 %v1485
      %1504 = vmatprep.subr.bf16.mxu0 0
      %1505 = vmatpush1.bf16.msra.mxu0 %v1486
      %1506 = vmatprep.subr.bf16.mxu0 0
      %1507 = vmatpush1.bf16.msra.mxu0 %v1487
      %1508 = vmatprep.subr.bf16.mxu0 0
      %1509 = vmatpush1.bf16.msra.mxu0 %v1488
      %1510 = vmatprep.subr.bf16.mxu0 0
      %1511 = vmatpush1.bf16.msra.mxu0 %v1489
      %1512 = vmatprep.subr.bf16.mxu0 0
      %1513 = vmatpush1.bf16.msra.mxu0 %v1490
      %1514 = vmatprep.subr.bf16.mxu0 0
      %1515 = vmatpush1.bf16.msra.mxu0 %v1491
      %1516 = vmatprep.subr.bf16.mxu0 0
      %1517 = vmatpush1.bf16.msra.mxu0 0
      %1518 = vmatprep.subr.bf16.mxu0 0
      %1519 = vmatpush1.bf16.msra.mxu0 0
      %1520 = vmatprep.subr.bf16.mxu0 0
      %1521 = vmatpush1.bf16.msra.mxu0 0
      %1522 = vmatprep.subr.bf16.mxu0 0
      %1523 = vmatpush1.bf16.msra.mxu0 0
      %1524 = vmatprep.subr.bf16.mxu0 0
      %1525 = vmatpush1.bf16.msra.mxu0 0
      %1526 = vmatprep.subr.bf16.mxu0 0
      %1527 = vmatpush1.bf16.msra.mxu0 0
      %1528 = vmatprep.subr.bf16.mxu0 0
      %1529 = vmatpush1.bf16.msra.mxu0 0
      %1530 = vmatprep.subr.bf16.mxu0 0
      %1531 = vmatpush1.bf16.msra.mxu0 0
      %1532 = vmatprep.mubr.bf16.mxu0 0
      %1533 = vmatmul.mubr.bf16.gmra.mrb[0].mxu0 %v1447
      %v1534 = vpop.f32.mrb[0].mxu0
      %v1535 = vadd.f32 0.0, %v1534
      %v1536 = vpop.f32.mrb[0].mxu0
      %v1537 = vpop.f32.mrb[0].mxu0
      %v1538 = vadd.f32 0.0, %v1537
      %v1539 = vpop.f32.mrb[0].mxu0
      %1540 = vmatprep.mubr.bf16.mxu0 0
      %1541 = vmatmul.mubr.bf16.gmra.mrb[0].mxu0 %v1449
      %v1542 = vpop.f32.mrb[0].mxu0
      %v1543 = vadd.f32 0.0, %v1542
      %v1544 = vpop.f32.mrb[0].mxu0
      %v1545 = vpop.f32.mrb[0].mxu0
      %v1546 = vadd.f32 0.0, %v1545
      %v1547 = vpop.f32.mrb[0].mxu0
      %1548 = vdwg.mxu0
      %v1549 = vadd.f32 %v1420, %v1535
      %v1550 = vadd.f32 %v1421, %v1538
      %v1551 = vadd.f32 %v1422, %v1543
      %v1552 = vadd.f32 %v1423, %v1546
      %v1553 = vld [vmem:[#allocation2 + $0x18] sm:$0x1f]
      %s1554 = scalar_lea.vmem %s5, 320
      %v1555 = vld [vmem:[%s1554] sm:$0xf]
      %v1556 = vld [vmem:[%s1554 + $0x4] sm:$0xf]
      %v1557 = vld [vmem:[%s1554 + $0x8] sm:$0xf]
      %v1558 = vld [vmem:[%s1554 + $0xc] sm:$0xf]
      %v1559 = vld [vmem:[%s1554 + $0x10] sm:$0xf]
      %v1560 = vld [vmem:[%s1554 + $0x14] sm:$0xf]
      %v1561 = vld [vmem:[%s1554 + $0x18] sm:$0xf]
      %v1562 = vld [vmem:[%s1554 + $0x1c] sm:$0xf]
      %v1563 = vld [vmem:[%s1554 + $0x20] sm:$0xf]
      %v1564 = vld [vmem:[%s1554 + $0x24] sm:$0xf]
      %v1565 = vld [vmem:[%s1554 + $0x28] sm:$0xf]
      %v1566 = vld [vmem:[%s1554 + $0x2c] sm:$0xf]
      %v1567 = vld [vmem:[%s1554 + $0x30] sm:$0xf]
      %v1568 = vld [vmem:[%s1554 + $0x34] sm:$0xf]
      %v1569 = vld [vmem:[%s1554 + $0x38] sm:$0xf]
      %v1570 = vld [vmem:[%s1554 + $0x3c] sm:$0xf]
      %v1572 = vshrl.u32 %v1424, 16
      %v1574 = vrot.slane %v1572, 4
      %v1575 = vshll.u32 %v1424, 16
      %v1577 = vrot.slane %v1575, 5
      %v1578 = vor.u32 %v1574, %v1577
      %v1579 = vrot.slane %v1304, 4
      %v1580 = vrot.slane %v1307, 5
      %v1581 = vor.u32 %v1579, %v1580
      %v1582 = vsel %vm1150, %v1578, %v1581
      %v1584 = vshrl.u32 %v1553, 16
      %v1586 = vrot.slane %v1584, 4
      %v1587 = vshll.u32 %v1553, 16
      %v1589 = vrot.slane %v1587, 5
      %v1590 = vor.u32 %v1586, %v1589
      %v1591 = vsel %vm1150, %v1581, %v1590
      %v1610 = vunpack.c.l.b16 %v1555
      %v1611 = vunpack.c.l.b16 %v1556
      %v1612 = vunpack.c.l.b16 %v1557
      %v1613 = vunpack.c.l.b16 %v1558
      %v1614 = vunpack.c.l.b16 %v1559
      %v1615 = vunpack.c.l.b16 %v1560
      %v1616 = vunpack.c.l.b16 %v1561
      %v1617 = vunpack.c.l.b16 %v1562
      %v1618 = vunpack.c.l.b16 %v1563
      %v1619 = vunpack.c.l.b16 %v1564
      %v1620 = vunpack.c.l.b16 %v1565
      %v1621 = vunpack.c.l.b16 %v1566
      %v1622 = vunpack.c.l.b16 %v1567
      %v1623 = vunpack.c.l.b16 %v1568
      %v1624 = vunpack.c.l.b16 %v1569
      %v1625 = vunpack.c.l.b16 %v1570
      %v1626 = vpack.c.b16 %v1611, %v1610
      %v1627 = vpack.c.b16 %v1613, %v1612
      %v1628 = vpack.c.b16 %v1615, %v1614
      %v1629 = vpack.c.b16 %v1617, %v1616
      %v1630 = vpack.c.b16 %v1619, %v1618
      %v1631 = vpack.c.b16 %v1621, %v1620
      %v1632 = vpack.c.b16 %v1623, %v1622
      %v1633 = vpack.c.b16 %v1625, %v1624
      %1642 = vmatprep.subr.bf16.mxu0 0
      %1643 = vmatpush1.bf16.msra.mxu0 %v1626
      %1644 = vmatprep.subr.bf16.mxu0 0
      %1645 = vmatpush1.bf16.msra.mxu0 %v1627
      %1646 = vmatprep.subr.bf16.mxu0 0
      %1647 = vmatpush1.bf16.msra.mxu0 %v1628
      %1648 = vmatprep.subr.bf16.mxu0 0
      %1649 = vmatpush1.bf16.msra.mxu0 %v1629
      %1650 = vmatprep.subr.bf16.mxu0 0
      %1651 = vmatpush1.bf16.msra.mxu0 %v1630
      %1652 = vmatprep.subr.bf16.mxu0 0
      %1653 = vmatpush1.bf16.msra.mxu0 %v1631
      %1654 = vmatprep.subr.bf16.mxu0 0
      %1655 = vmatpush1.bf16.msra.mxu0 %v1632
      %1656 = vmatprep.subr.bf16.mxu0 0
      %1657 = vmatpush1.bf16.msra.mxu0 %v1633
      %1658 = vmatprep.subr.bf16.mxu0 0
      %1659 = vmatpush1.bf16.msra.mxu0 0
      %1660 = vmatprep.subr.bf16.mxu0 0
      %1661 = vmatpush1.bf16.msra.mxu0 0
      %1662 = vmatprep.subr.bf16.mxu0 0
      %1663 = vmatpush1.bf16.msra.mxu0 0
      %1664 = vmatprep.subr.bf16.mxu0 0
      %1665 = vmatpush1.bf16.msra.mxu0 0
      %1666 = vmatprep.subr.bf16.mxu0 0
      %1667 = vmatpush1.bf16.msra.mxu0 0
      %1668 = vmatprep.subr.bf16.mxu0 0
      %1669 = vmatpush1.bf16.msra.mxu0 0
      %1670 = vmatprep.subr.bf16.mxu0 0
      %1671 = vmatpush1.bf16.msra.mxu0 0
      %1672 = vmatprep.subr.bf16.mxu0 0
      %1673 = vmatpush1.bf16.msra.mxu0 0
      %1674 = vmatprep.mubr.bf16.mxu0 0
      %1675 = vmatmul.mubr.bf16.gmra.mrb[0].mxu0 %v1582
      %v1676 = vpop.f32.mrb[0].mxu0
      %v1677 = vadd.f32 0.0, %v1676
      %v1678 = vpop.f32.mrb[0].mxu0
      %v1679 = vpop.f32.mrb[0].mxu0
      %v1680 = vadd.f32 0.0, %v1679
      %v1681 = vpop.f32.mrb[0].mxu0
      %1682 = vmatprep.mubr.bf16.mxu0 0
      %1683 = vmatmul.mubr.bf16.gmra.mrb[0].mxu0 %v1591
      %v1684 = vpop.f32.mrb[0].mxu0
      %v1685 = vadd.f32 0.0, %v1684
      %v1686 = vpop.f32.mrb[0].mxu0
      %v1687 = vpop.f32.mrb[0].mxu0
      %v1688 = vadd.f32 0.0, %v1687
      %v1689 = vpop.f32.mrb[0].mxu0
      %1690 = vdwg.mxu0
      %v1691 = vadd.f32 %v1549, %v1677
      %v1692 = vadd.f32 %v1550, %v1680
      %v1693 = vadd.f32 %v1551, %v1685
      %v1694 = vadd.f32 %v1552, %v1688
      %v1695 = vld [vmem:[#allocation2 + $0x10] sm:$0xf8]
      %v1696 = vld [vmem:[#allocation2 + $0x18] sm:$0xff]
      %v1697 = vld [vmem:[#allocation2 + $0x20] sm:$0xf]
      %s1698 = scalar_lea.vmem %s5, 384
      %v1699 = vld [vmem:[%s1698] sm:$0xf]
      %v1700 = vld [vmem:[%s1698 + $0x4] sm:$0xf]
      %v1701 = vld [vmem:[%s1698 + $0x8] sm:$0xf]
      %v1702 = vld [vmem:[%s1698 + $0xc] sm:$0xf]
      %v1703 = vld [vmem:[%s1698 + $0x10] sm:$0xf]
      %v1704 = vld [vmem:[%s1698 + $0x14] sm:$0xf]
      %v1705 = vld [vmem:[%s1698 + $0x18] sm:$0xf]
      %v1706 = vld [vmem:[%s1698 + $0x1c] sm:$0xf]
      %v1707 = vld [vmem:[%s1698 + $0x20] sm:$0xf]
      %v1708 = vld [vmem:[%s1698 + $0x24] sm:$0xf]
      %v1709 = vld [vmem:[%s1698 + $0x28] sm:$0xf]
      %v1710 = vld [vmem:[%s1698 + $0x2c] sm:$0xf]
      %v1711 = vld [vmem:[%s1698 + $0x30] sm:$0xf]
      %v1712 = vld [vmem:[%s1698 + $0x34] sm:$0xf]
      %v1713 = vld [vmem:[%s1698 + $0x38] sm:$0xf]
      %v1714 = vld [vmem:[%s1698 + $0x3c] sm:$0xf]
      %v1716 = vshrl.u32 %v1695, 16
      %v1718 = vrot.slane %v1716, 3
      %v1719 = vshll.u32 %v1695, 16
      %v1721 = vrot.slane %v1719, 4
      %v1722 = vor.u32 %v1718, %v1721
      %v1724 = vshrl.u32 %v1696, 16
      %v1726 = vrot.slane %v1724, 3
      %v1727 = vshll.u32 %v1696, 16
      %v1729 = vrot.slane %v1727, 4
      %v1730 = vor.u32 %v1726, %v1729
      %v1731 = vsel %vm1006, %v1722, %v1730
      %v1733 = vshrl.u32 %v1697, 16
      %v1735 = vrot.slane %v1733, 3
      %v1736 = vshll.u32 %v1697, 16
      %v1738 = vrot.slane %v1736, 4
      %v1739 = vor.u32 %v1735, %v1738
      %v1740 = vsel %vm1006, %v1730, %v1739
      %v1759 = vunpack.c.l.b16 %v1699
      %v1760 = vunpack.c.l.b16 %v1700
      %v1761 = vunpack.c.l.b16 %v1701
      %v1762 = vunpack.c.l.b16 %v1702
      %v1763 = vunpack.c.l.b16 %v1703
      %v1764 = vunpack.c.l.b16 %v1704
      %v1765 = vunpack.c.l.b16 %v1705
      %v1766 = vunpack.c.l.b16 %v1706
      %v1767 = vunpack.c.l.b16 %v1707
      %v1768 = vunpack.c.l.b16 %v1708
      %v1769 = vunpack.c.l.b16 %v1709
      %v1770 = vunpack.c.l.b16 %v1710
      %v1771 = vunpack.c.l.b16 %v1711
      %v1772 = vunpack.c.l.b16 %v1712
      %v1773 = vunpack.c.l.b16 %v1713
      %v1774 = vunpack.c.l.b16 %v1714
      %v1775 = vpack.c.b16 %v1760, %v1759
      %v1776 = vpack.c.b16 %v1762, %v1761
      %v1777 = vpack.c.b16 %v1764, %v1763
      %v1778 = vpack.c.b16 %v1766, %v1765
      %v1779 = vpack.c.b16 %v1768, %v1767
      %v1780 = vpack.c.b16 %v1770, %v1769
      %v1781 = vpack.c.b16 %v1772, %v1771
      %v1782 = vpack.c.b16 %v1774, %v1773
      %1791 = vmatprep.subr.bf16.mxu0 0
      %1792 = vmatpush1.bf16.msra.mxu0 %v1775
      %1793 = vmatprep.subr.bf16.mxu0 0
      %1794 = vmatpush1.bf16.msra.mxu0 %v1776
      %1795 = vmatprep.subr.bf16.mxu0 0
      %1796 = vmatpush1.bf16.msra.mxu0 %v1777
      %1797 = vmatprep.subr.bf16.mxu0 0
      %1798 = vmatpush1.bf16.msra.mxu0 %v1778
      %1799 = vmatprep.subr.bf16.mxu0 0
      %1800 = vmatpush1.bf16.msra.mxu0 %v1779
      %1801 = vmatprep.subr.bf16.mxu0 0
      %1802 = vmatpush1.bf16.msra.mxu0 %v1780
      %1803 = vmatprep.subr.bf16.mxu0 0
      %1804 = vmatpush1.bf16.msra.mxu0 %v1781
      %1805 = vmatprep.subr.bf16.mxu0 0
      %1806 = vmatpush1.bf16.msra.mxu0 %v1782
      %1807 = vmatprep.subr.bf16.mxu0 0
      %1808 = vmatpush1.bf16.msra.mxu0 0
      %1809 = vmatprep.subr.bf16.mxu0 0
      %1810 = vmatpush1.bf16.msra.mxu0 0
      %1811 = vmatprep.subr.bf16.mxu0 0
      %1812 = vmatpush1.bf16.msra.mxu0 0
      %1813 = vmatprep.subr.bf16.mxu0 0
      %1814 = vmatpush1.bf16.msra.mxu0 0
      %1815 = vmatprep.subr.bf16.mxu0 0
      %1816 = vmatpush1.bf16.msra.mxu0 0
      %1817 = vmatprep.subr.bf16.mxu0 0
      %1818 = vmatpush1.bf16.msra.mxu0 0
      %1819 = vmatprep.subr.bf16.mxu0 0
      %1820 = vmatpush1.bf16.msra.mxu0 0
      %1821 = vmatprep.subr.bf16.mxu0 0
      %1822 = vmatpush1.bf16.msra.mxu0 0
      %1823 = vmatprep.mubr.bf16.mxu0 0
      %1824 = vmatmul.mubr.bf16.gmra.mrb[0].mxu0 %v1731
      %v1825 = vpop.f32.mrb[0].mxu0
      %v1826 = vadd.f32 0.0, %v1825
      %v1827 = vpop.f32.mrb[0].mxu0
      %v1828 = vpop.f32.mrb[0].mxu0
      %v1829 = vadd.f32 0.0, %v1828
      %v1830 = vpop.f32.mrb[0].mxu0
      %1831 = vmatprep.mubr.bf16.mxu0 0
      %1832 = vmatmul.mubr.bf16.gmra.mrb[0].mxu0 %v1740
      %v1833 = vpop.f32.mrb[0].mxu0
      %v1834 = vadd.f32 0.0, %v1833
      %v1835 = vpop.f32.mrb[0].mxu0
      %v1836 = vpop.f32.mrb[0].mxu0
      %v1837 = vadd.f32 0.0, %v1836
      %v1838 = vpop.f32.mrb[0].mxu0
      %1839 = vdwg.mxu0
      %v1840 = vadd.f32 %v1691, %v1826
      %v1841 = vadd.f32 %v1692, %v1829
      %v1842 = vadd.f32 %v1693, %v1834
      %v1843 = vadd.f32 %v1694, %v1837
      %v1844 = vld [vmem:[#allocation2 + $0x10] sm:$0xf0]
      %s1845 = scalar_lea.vmem %s5, 448
      %v1846 = vld [vmem:[%s1845] sm:$0xf]
      %v1847 = vld [vmem:[%s1845 + $0x4] sm:$0xf]
      %v1848 = vld [vmem:[%s1845 + $0x8] sm:$0xf]
      %v1849 = vld [vmem:[%s1845 + $0xc] sm:$0xf]
      %v1850 = vld [vmem:[%s1845 + $0x10] sm:$0xf]
      %v1851 = vld [vmem:[%s1845 + $0x14] sm:$0xf]
      %v1852 = vld [vmem:[%s1845 + $0x18] sm:$0xf]
      %v1853 = vld [vmem:[%s1845 + $0x1c] sm:$0xf]
      %v1854 = vld [vmem:[%s1845 + $0x20] sm:$0xf]
      %v1855 = vld [vmem:[%s1845 + $0x24] sm:$0xf]
      %v1856 = vld [vmem:[%s1845 + $0x28] sm:$0xf]
      %v1857 = vld [vmem:[%s1845 + $0x2c] sm:$0xf]
      %v1858 = vld [vmem:[%s1845 + $0x30] sm:$0xf]
      %v1859 = vld [vmem:[%s1845 + $0x34] sm:$0xf]
      %v1860 = vld [vmem:[%s1845 + $0x38] sm:$0xf]
      %v1861 = vld [vmem:[%s1845 + $0x3c] sm:$0xf]
      %v1865 = vrot.slane %v1844, 4
      %v1866 = vrot.slane %v1696, 4
      %v1867 = vsel %vm720, %v1865, %v1866
      %v1868 = vrot.slane %v1697, 4
      %v1869 = vsel %vm720, %v1866, %v1868
      %v1888 = vunpack.c.l.b16 %v1846
      %v1889 = vunpack.c.l.b16 %v1847
      %v1890 = vunpack.c.l.b16 %v1848
      %v1891 = vunpack.c.l.b16 %v1849
      %v1892 = vunpack.c.l.b16 %v1850
      %v1893 = vunpack.c.l.b16 %v1851
      %v1894 = vunpack.c.l.b16 %v1852
      %v1895 = vunpack.c.l.b16 %v1853
      %v1896 = vunpack.c.l.b16 %v1854
      %v1897 = vunpack.c.l.b16 %v1855
      %v1898 = vunpack.c.l.b16 %v1856
      %v1899 = vunpack.c.l.b16 %v1857
      %v1900 = vunpack.c.l.b16 %v1858
      %v1901 = vunpack.c.l.b16 %v1859
      %v1902 = vunpack.c.l.b16 %v1860
      %v1903 = vunpack.c.l.b16 %v1861
      %v1904 = vpack.c.b16 %v1889, %v1888
      %v1905 = vpack.c.b16 %v1891, %v1890
      %v1906 = vpack.c.b16 %v1893, %v1892
      %v1907 = vpack.c.b16 %v1895, %v1894
      %v1908 = vpack.c.b16 %v1897, %v1896
      %v1909 = vpack.c.b16 %v1899, %v1898
      %v1910 = vpack.c.b16 %v1901, %v1900
      %v1911 = vpack.c.b16 %v1903, %v1902
      %1920 = vmatprep.subr.bf16.mxu0 0
      %1921 = vmatpush1.bf16.msra.mxu0 %v1904
      %1922 = vmatprep.subr.bf16.mxu0 0
      %1923 = vmatpush1.bf16.msra.mxu0 %v1905
      %1924 = vmatprep.subr.bf16.mxu0 0
      %1925 = vmatpush1.bf16.msra.mxu0 %v1906
      %1926 = vmatprep.subr.bf16.mxu0 0
      %1927 = vmatpush1.bf16.msra.mxu0 %v1907
      %1928 = vmatprep.subr.bf16.mxu0 0
      %1929 = vmatpush1.bf16.msra.mxu0 %v1908
      %1930 = vmatprep.subr.bf16.mxu0 0
      %1931 = vmatpush1.bf16.msra.mxu0 %v1909
      %1932 = vmatprep.subr.bf16.mxu0 0
      %1933 = vmatpush1.bf16.msra.mxu0 %v1910
      %1934 = vmatprep.subr.bf16.mxu0 0
      %1935 = vmatpush1.bf16.msra.mxu0 %v1911
      %1936 = vmatprep.subr.bf16.mxu0 0
      %1937 = vmatpush1.bf16.msra.mxu0 0
      %1938 = vmatprep.subr.bf16.mxu0 0
      %1939 = vmatpush1.bf16.msra.mxu0 0
      %1940 = vmatprep.subr.bf16.mxu0 0
      %1941 = vmatpush1.bf16.msra.mxu0 0
      %1942 = vmatprep.subr.bf16.mxu0 0
      %1943 = vmatpush1.bf16.msra.mxu0 0
      %1944 = vmatprep.subr.bf16.mxu0 0
      %1945 = vmatpush1.bf16.msra.mxu0 0
      %1946 = vmatprep.subr.bf16.mxu0 0
      %1947 = vmatpush1.bf16.msra.mxu0 0
      %1948 = vmatprep.subr.bf16.mxu0 0
      %1949 = vmatpush1.bf16.msra.mxu0 0
      %1950 = vmatprep.subr.bf16.mxu0 0
      %1951 = vmatpush1.bf16.msra.mxu0 0
      %1952 = vmatprep.mubr.bf16.mxu0 0
      %1953 = vmatmul.mubr.bf16.gmra.mrb[0].mxu0 %v1867
      %v1954 = vpop.f32.mrb[0].mxu0
      %v1955 = vadd.f32 0.0, %v1954
      %v1956 = vpop.f32.mrb[0].mxu0
      %v1957 = vpop.f32.mrb[0].mxu0
      %v1958 = vadd.f32 0.0, %v1957
      %v1959 = vpop.f32.mrb[0].mxu0
      %1960 = vmatprep.mubr.bf16.mxu0 0
      %1961 = vmatmul.mubr.bf16.gmra.mrb[0].mxu0 %v1869
      %v1962 = vpop.f32.mrb[0].mxu0
      %v1963 = vadd.f32 0.0, %v1962
      %v1964 = vpop.f32.mrb[0].mxu0
      %v1965 = vpop.f32.mrb[0].mxu0
      %v1966 = vadd.f32 0.0, %v1965
      %v1967 = vpop.f32.mrb[0].mxu0
      %1968 = vdwg.mxu0
      %v1969 = vadd.f32 %v1840, %v1955
      %v1970 = vadd.f32 %v1841, %v1958
      %v1971 = vadd.f32 %v1842, %v1963
      %v1972 = vadd.f32 %v1843, %v1966
      %v1973 = vld [vmem:[#allocation2 + $0x20] sm:$0x1f]
      %s1974 = scalar_lea.vmem %s5, 512
      %v1975 = vld [vmem:[%s1974] sm:$0xf]
      %v1976 = vld [vmem:[%s1974 + $0x4] sm:$0xf]
      %v1977 = vld [vmem:[%s1974 + $0x8] sm:$0xf]
      %v1978 = vld [vmem:[%s1974 + $0xc] sm:$0xf]
      %v1979 = vld [vmem:[%s1974 + $0x10] sm:$0xf]
      %v1980 = vld [vmem:[%s1974 + $0x14] sm:$0xf]
      %v1981 = vld [vmem:[%s1974 + $0x18] sm:$0xf]
      %v1982 = vld [vmem:[%s1974 + $0x1c] sm:$0xf]
      %v1983 = vld [vmem:[%s1974 + $0x20] sm:$0xf]
      %v1984 = vld [vmem:[%s1974 + $0x24] sm:$0xf]
      %v1985 = vld [vmem:[%s1974 + $0x28] sm:$0xf]
      %v1986 = vld [vmem:[%s1974 + $0x2c] sm:$0xf]
      %v1987 = vld [vmem:[%s1974 + $0x30] sm:$0xf]
      %v1988 = vld [vmem:[%s1974 + $0x34] sm:$0xf]
      %v1989 = vld [vmem:[%s1974 + $0x38] sm:$0xf]
      %v1990 = vld [vmem:[%s1974 + $0x3c] sm:$0xf]
      %v1992 = vshrl.u32 %v1844, 16
      %v1994 = vrot.slane %v1992, 4
      %v1995 = vshll.u32 %v1844, 16
      %v1997 = vrot.slane %v1995, 5
      %v1998 = vor.u32 %v1994, %v1997
      %v1999 = vrot.slane %v1724, 4
      %v2000 = vrot.slane %v1727, 5
      %v2001 = vor.u32 %v1999, %v2000
      %v2002 = vsel %vm1150, %v1998, %v2001
      %v2004 = vshrl.u32 %v1973, 16
      %v2006 = vrot.slane %v2004, 4
      %v2007 = vshll.u32 %v1973, 16
      %v2009 = vrot.slane %v2007, 5
      %v2010 = vor.u32 %v2006, %v2009
      %v2011 = vsel %vm1150, %v2001, %v2010
      %v2030 = vunpack.c.l.b16 %v1975
      %v2031 = vunpack.c.l.b16 %v1976
      %v2032 = vunpack.c.l.b16 %v1977
      %v2033 = vunpack.c.l.b16 %v1978
      %v2034 = vunpack.c.l.b16 %v1979
      %v2035 = vunpack.c.l.b16 %v1980
      %v2036 = vunpack.c.l.b16 %v1981
      %v2037 = vunpack.c.l.b16 %v1982
      %v2038 = vunpack.c.l.b16 %v1983
      %v2039 = vunpack.c.l.b16 %v1984
      %v2040 = vunpack.c.l.b16 %v1985
      %v2041 = vunpack.c.l.b16 %v1986
      %v2042 = vunpack.c.l.b16 %v1987
      %v2043 = vunpack.c.l.b16 %v1988
      %v2044 = vunpack.c.l.b16 %v1989
      %v2045 = vunpack.c.l.b16 %v1990
      %v2046 = vpack.c.b16 %v2031, %v2030
      %v2047 = vpack.c.b16 %v2033, %v2032
      %v2048 = vpack.c.b16 %v2035, %v2034
      %v2049 = vpack.c.b16 %v2037, %v2036
      %v2050 = vpack.c.b16 %v2039, %v2038
      %v2051 = vpack.c.b16 %v2041, %v2040
      %v2052 = vpack.c.b16 %v2043, %v2042
      %v2053 = vpack.c.b16 %v2045, %v2044
      %2062 = vmatprep.subr.bf16.mxu0 0
      %2063 = vmatpush1.bf16.msra.mxu0 %v2046
      %2064 = vmatprep.subr.bf16.mxu0 0
      %2065 = vmatpush1.bf16.msra.mxu0 %v2047
      %2066 = vmatprep.subr.bf16.mxu0 0
      %2067 = vmatpush1.bf16.msra.mxu0 %v2048
      %2068 = vmatprep.subr.bf16.mxu0 0
      %2069 = vmatpush1.bf16.msra.mxu0 %v2049
      %2070 = vmatprep.subr.bf16.mxu0 0
      %2071 = vmatpush1.bf16.msra.mxu0 %v2050
      %2072 = vmatprep.subr.bf16.mxu0 0
      %2073 = vmatpush1.bf16.msra.mxu0 %v2051
      %2074 = vmatprep.subr.bf16.mxu0 0
      %2075 = vmatpush1.bf16.msra.mxu0 %v2052
      %2076 = vmatprep.subr.bf16.mxu0 0
      %2077 = vmatpush1.bf16.msra.mxu0 %v2053
      %2078 = vmatprep.subr.bf16.mxu0 0
      %2079 = vmatpush1.bf16.msra.mxu0 0
      %2080 = vmatprep.subr.bf16.mxu0 0
      %2081 = vmatpush1.bf16.msra.mxu0 0
      %2082 = vmatprep.subr.bf16.mxu0 0
      %2083 = vmatpush1.bf16.msra.mxu0 0
      %2084 = vmatprep.subr.bf16.mxu0 0
      %2085 = vmatpush1.bf16.msra.mxu0 0
      %2086 = vmatprep.subr.bf16.mxu0 0
      %2087 = vmatpush1.bf16.msra.mxu0 0
      %2088 = vmatprep.subr.bf16.mxu0 0
      %2089 = vmatpush1.bf16.msra.mxu0 0
      %2090 = vmatprep.subr.bf16.mxu0 0
      %2091 = vmatpush1.bf16.msra.mxu0 0
      %2092 = vmatprep.subr.bf16.mxu0 0
      %2093 = vmatpush1.bf16.msra.mxu0 0
      %2094 = vmatprep.mubr.bf16.mxu0 0
      %2095 = vmatmul.mubr.bf16.gmra.mrb[0].mxu0 %v2002
      %v2096 = vpop.f32.mrb[0].mxu0
      %v2097 = vadd.f32 0.0, %v2096
      %v2098 = vpop.f32.mrb[0].mxu0
      %v2099 = vpop.f32.mrb[0].mxu0
      %v2100 = vadd.f32 0.0, %v2099
      %v2101 = vpop.f32.mrb[0].mxu0
      %2102 = vmatprep.mubr.bf16.mxu0 0
      %2103 = vmatmul.mubr.bf16.gmra.mrb[0].mxu0 %v2011
      %v2104 = vpop.f32.mrb[0].mxu0
      %v2105 = vadd.f32 0.0, %v2104
      %v2106 = vpop.f32.mrb[0].mxu0
      %v2107 = vpop.f32.mrb[0].mxu0
      %v2108 = vadd.f32 0.0, %v2107
      %v2109 = vpop.f32.mrb[0].mxu0
      %2110 = vdwg.mxu0
      %v2111 = vadd.f32 %v1969, %v2097
      %v2112 = vadd.f32 %v1970, %v2100
      %v2113 = vadd.f32 %v1971, %v2105
      %v2114 = vadd.f32 %v1972, %v2108
      %v2115 = vld [vmem:[%s6] sm:$0x1]
      %v2117 = vlaneseq
      %v2118 = vshrl.u32 %v2117, 7
      %v2119 = vsub.s32 0, %v2118
      %v2120 = vrot.slane %v2115, %v2119
      %v2122 = vadd.f32 %v2111, %v2120
      %v2123 = vadd.f32 %v2112, %v2120
      %v2124 = vadd.f32 %v2113, %v2120
      %v2125 = vadd.f32 %v2114, %v2120
      %v2126 = vmax.f32 %v2122, 0.0
      %v2127 = vmax.f32 %v2123, 0.0
      %v2128 = vmax.f32 %v2124, 0.0
      %v2129 = vmax.f32 %v2125, 0.0
      %v2130 = vpack.c.bf16 %v2127, %v2126
      %v2131 = vpack.c.bf16 %v2129, %v2128
      %v2132 = vld [vmem:[%s7] sm:$0xf]
      %v2133 = vld [vmem:[%s7 + $0x4] sm:$0xf]
      %v2134 = vld [vmem:[%s7 + $0x8] sm:$0xf]
      %v2135 = vld [vmem:[%s7 + $0xc] sm:$0xf]
      %v2136 = vld [vmem:[%s7 + $0x10] sm:$0xf]
      %v2137 = vld [vmem:[%s7 + $0x14] sm:$0xf]
      %v2138 = vld [vmem:[%s7 + $0x18] sm:$0xf]
      %v2139 = vld [vmem:[%s7 + $0x1c] sm:$0xf]
      %v2140 = vld [vmem:[%s7 + $0x20] sm:$0xf]
      %v2141 = vld [vmem:[%s7 + $0x24] sm:$0xf]
      %v2142 = vld [vmem:[%s7 + $0x28] sm:$0xf]
      %v2143 = vld [vmem:[%s7 + $0x2c] sm:$0xf]
      %v2144 = vld [vmem:[%s7 + $0x30] sm:$0xf]
      %v2145 = vld [vmem:[%s7 + $0x34] sm:$0xf]
      %v2146 = vld [vmem:[%s7 + $0x38] sm:$0xf]
      %v2147 = vld [vmem:[%s7 + $0x3c] sm:$0xf]
      %v2148 = vld [vmem:[%s8] sm:$0x1]
      %v2150 = vlaneseq
      %v2151 = vshrl.u32 %v2150, 7
      %v2152 = vsub.s32 0, %v2151
      %v2153 = vrot.slane %v2148, %v2152
      %v2171 = vunpack.c.l.b16 %v2132
      %v2172 = vunpack.c.l.b16 %v2133
      %v2173 = vunpack.c.l.b16 %v2134
      %v2174 = vunpack.c.l.b16 %v2135
      %v2175 = vunpack.c.l.b16 %v2136
      %v2176 = vunpack.c.l.b16 %v2137
      %v2177 = vunpack.c.l.b16 %v2138
      %v2178 = vunpack.c.l.b16 %v2139
      %v2179 = vunpack.c.l.b16 %v2140
      %v2180 = vunpack.c.l.b16 %v2141
      %v2181 = vunpack.c.l.b16 %v2142
      %v2182 = vunpack.c.l.b16 %v2143
      %v2183 = vunpack.c.l.b16 %v2144
      %v2184 = vunpack.c.l.b16 %v2145
      %v2185 = vunpack.c.l.b16 %v2146
      %v2186 = vunpack.c.l.b16 %v2147
      %v2187 = vpack.c.b16 %v2172, %v2171
      %v2188 = vpack.c.b16 %v2174, %v2173
      %v2189 = vpack.c.b16 %v2176, %v2175
      %v2190 = vpack.c.b16 %v2178, %v2177
      %v2191 = vpack.c.b16 %v2180, %v2179
      %v2192 = vpack.c.b16 %v2182, %v2181
      %v2193 = vpack.c.b16 %v2184, %v2183
      %v2194 = vpack.c.b16 %v2186, %v2185
      %2203 = vmatprep.subr.bf16.mxu0 0
      %2204 = vmatpush1.bf16.msra.mxu0 %v2187
      %2205 = vmatprep.subr.bf16.mxu0 0
      %2206 = vmatpush1.bf16.msra.mxu0 %v2188
      %2207 = vmatprep.subr.bf16.mxu0 0
      %2208 = vmatpush1.bf16.msra.mxu0 %v2189
      %2209 = vmatprep.subr.bf16.mxu0 0
      %2210 = vmatpush1.bf16.msra.mxu0 %v2190
      %2211 = vmatprep.subr.bf16.mxu0 0
      %2212 = vmatpush1.bf16.msra.mxu0 %v2191
      %2213 = vmatprep.subr.bf16.mxu0 0
      %2214 = vmatpush1.bf16.msra.mxu0 %v2192
      %2215 = vmatprep.subr.bf16.mxu0 0
      %2216 = vmatpush1.bf16.msra.mxu0 %v2193
      %2217 = vmatprep.subr.bf16.mxu0 0
      %2218 = vmatpush1.bf16.msra.mxu0 %v2194
      %2219 = vmatprep.subr.bf16.mxu0 0
      %2220 = vmatpush1.bf16.msra.mxu0 0
      %2221 = vmatprep.subr.bf16.mxu0 0
      %2222 = vmatpush1.bf16.msra.mxu0 0
      %2223 = vmatprep.subr.bf16.mxu0 0
      %2224 = vmatpush1.bf16.msra.mxu0 0
      %2225 = vmatprep.subr.bf16.mxu0 0
      %2226 = vmatpush1.bf16.msra.mxu0 0
      %2227 = vmatprep.subr.bf16.mxu0 0
      %2228 = vmatpush1.bf16.msra.mxu0 0
      %2229 = vmatprep.subr.bf16.mxu0 0
      %2230 = vmatpush1.bf16.msra.mxu0 0
      %2231 = vmatprep.subr.bf16.mxu0 0
      %2232 = vmatpush1.bf16.msra.mxu0 0
      %2233 = vmatprep.subr.bf16.mxu0 0
      %2234 = vmatpush1.bf16.msra.mxu0 0
      %2235 = vmatprep.mubr.bf16.mxu0 0
      %2236 = vmatmul.mubr.bf16.gmra.mrb[0].mxu0 %v2130
      %v2237 = vpop.f32.mrb[0].mxu0
      %v2238 = vadd.f32 %v2153, %v2237
      %v2239 = vpop.f32.mrb[0].mxu0
      %v2240 = vpop.f32.mrb[0].mxu0
      %v2241 = vadd.f32 %v2153, %v2240
      %v2242 = vpop.f32.mrb[0].mxu0
      %2243 = vmatprep.mubr.bf16.mxu0 0
      %2244 = vmatmul.mubr.bf16.gmra.mrb[0].mxu0 %v2131
      %v2245 = vpop.f32.mrb[0].mxu0
      %v2246 = vadd.f32 %v2153, %v2245
      %v2247 = vpop.f32.mrb[0].mxu0
      %v2248 = vpop.f32.mrb[0].mxu0
      %v2249 = vadd.f32 %v2153, %v2248
      %v2250 = vpop.f32.mrb[0].mxu0
      %2251 = vdwg.mxu0
      %v2252 = vunpack.c.l.bf16 %v567
      %v2253 = vunpack.c.l.bf16 %v568
      %v2254 = vadd.f32 %v2238, %v2252
      %v2255 = vadd.f32 %v2241, %v2253
      %v2256 = vmax.f32 %v2254, 0.0
      %v2257 = vmax.f32 %v2255, 0.0
      %v2258 = vpack.c.bf16 %v2257, %v2256
      %v2260 = vunpack.c.l.b16 %v2258
      %v2261 = vunpack.c.h.b16 %v2258
      %v2262 = vpack.c.b16 %v2260, %v2260
      %v2263 = vpack.c.b16 %v2261, %v2261
      %2266 = vst [vmem:[%s478] sm:$0xf] %v2262
      %2267 = vst [vmem:[%s478 + $0x4] sm:$0xf] %v2263
      %v2268 = vunpack.c.l.bf16 %v730
      %v2269 = vunpack.c.l.bf16 %v731
      %v2270 = vadd.f32 %v2246, %v2268
      %v2271 = vadd.f32 %v2249, %v2269
      %v2272 = vmax.f32 %v2270, 0.0
      %v2273 = vmax.f32 %v2271, 0.0
      %v2274 = vpack.c.bf16 %v2273, %v2272
      %v2276 = vunpack.c.l.b16 %v2274
      %v2277 = vunpack.c.h.b16 %v2274
      %v2278 = vpack.c.b16 %v2276, %v2276
      %v2279 = vpack.c.b16 %v2277, %v2277
      %s2282 = scalar_lea.vmem %s478, 8
      %2283 = vst [vmem:[%s2282] sm:$0xf] %v2278
      %2284 = vst [vmem:[%s2282 + $0x4] sm:$0xf] %v2279
      %s2285 = smul.u32 2, %s25
      %p2286 = scmp.lt.s32.totalorder %s24, 1
      %s2287 = scalar_select %p2286, %s24, 1
      %p2288 = scmp.lt.s32.totalorder %s2285, 7
      %s2289 = scalar_select %p2288, %s2285, 7
      %s2290 = smul.addr %s2289, 2
      %s2291 = smul.addr %s2287, 16
      %s2292 = sadd.s32 %s2290, %s2291
      %s2293 = smul.addr %s2292, 4
      %s2294 = scalar_lea.vmem %s9, %s2293
      // Predicated region
      $region57: #{stage_forward.1} parent=55 // pred_check
        %p2295 = pneg %p272
      $region58: #{stage_forward.1} parent=55 // pred_check_branch
        %2297 = sbr.rel (%p2295) target = $region60
      $region59: #{stage_forward.1} parent=55 // pred_region
        %s2298 = smul.u32 2, %s25
      $region60: #{stage_forward.1} parent=55 // pred_fallthru
        _
    $region56: #{stage_forward.1} parent=5 // pred_fallthru
      _
    %p2299 = scmp.le.s32.totalorder 2, %s15
    // Predicated region
    $region61: #{stage_forward.1} parent=5 // pred_check
      %p2300 = pneg %p2299
    $region62: #{stage_forward.1} parent=5 // pred_check_branch
      %2302 = sbr.rel (%p2300) target = $region64
    $region63: #{stage_forward.1} parent=5 // pred_region
      %s2303 = ssub.s32 %s15, 2
      // Predicated region
      $region65: #{stage_forward.1} parent=63 // pred_check
        %p2304 = pneg %p278
      $region66: #{stage_forward.1} parent=63 // pred_check_branch
        %2306 = sbr.rel (%p2304) target = $region68
      $region67: #{stage_forward.1} parent=63 // pred_region
        %s2307 = smul.u32 2, %s27
        %p2308 = scmp.lt.s32.totalorder %s26, 1
        %s2309 = scalar_select %p2308, %s26, 1
        %p2310 = scmp.lt.s32.totalorder %s2307, 7
        %s2311 = scalar_select %p2310, %s2307, 7
        %s2312 = smul.addr %s2311, 2
        %s2313 = smul.addr %s2309, 16
        %s2314 = sadd.s32 %s2312, %s2313
        %s2315 = smul.addr %s2314, 4
        %s2316 = scalar_lea.vmem %s9, %s2315
      $region68: #{stage_forward.1} parent=63 // pred_fallthru
        _
    $region64: #{stage_forward.1} parent=5 // pred_fallthru
      _
  $region6: #{stage_forward.1} parent=0 // loop_footer
    %s19 = sadd.s32 1, %s15
  $region7: #{stage_forward.1} parent=0 // loop_footer_branch
    %14 = sbr.rel target = $region3
  $region8: #{stage_forward.1} parent=0 // loop_exit
    _

</llo_original>
